<compile_context>
chip_gen: v7x
topology: tpu7x:2x2x1
jax: 0.10.0
libtpu: 0.0.40
codegen_flags: <defaults>
</compile_context>

<pallas_src>
import math
from functools import partial

import jax
import jax.numpy as jnp
import numpy as np
from jax.experimental import pallas as pl
from jax.experimental.pallas import tpu as pltpu


# ----------------------------------------------------------------------------
# Fused kernel: per-batch QKV projection + all-head attention + out-projection.
#   grid = (B,); each step computes one (N, em) output slab.
# ----------------------------------------------------------------------------
def _make_mha_kernel(num_heads: int, d_K: int, d_V: int):
    H = num_heads
    dh = d_K // H
    dhv = d_V // H
    scale = 1.0 / math.sqrt(dh)

    def kernel(x_ref, w_qkv_ref, b_qkv_ref, wp_ref, bp_ref, o_ref):
        x = x_ref[0]                                              # (N, em)

        # Single fused projection: columns [0:d_K)=Q, [d_K:2d_K)=K,
        # [2d_K:2d_K+d_V)=V, each head-major (h*dh + d).
        qkv = jnp.dot(x, w_qkv_ref[...],
                      preferred_element_type=jnp.float32) + b_qkv_ref[...]

        heads = []
        for h in range(H):                                        # unrolled, H small
            qh = qkv[:, h * dh:(h + 1) * dh]                      # (N, dh)
            kh = qkv[:, d_K + h * dh: d_K + (h + 1) * dh]         # (N, dh)
            vh = qkv[:, 2 * d_K + h * dhv: 2 * d_K + (h + 1) * dhv]

            s = jnp.dot(qh, kh.T, preferred_element_type=jnp.float32) * scale
            m = jnp.max(s, axis=-1, keepdims=True)
            p = jnp.exp(s - m)
            l = jnp.sum(p, axis=-1, keepdims=True)
            r = pl.reciprocal(l, approx=True)                     # EUP vrcp
            r = r * (2.0 - l * r)                                 # one Newton step -> f32 accuracy
            heads.append(jnp.dot(p * r, vh,
                                 preferred_element_type=jnp.float32))

        y = jnp.concatenate(heads, axis=-1)                       # (N, d_V), lane-dense
        out = jnp.dot(y, wp_ref[...],
                      preferred_element_type=jnp.float32) + bp_ref[...]
        o_ref[0] = out.astype(o_ref.dtype)                        # (N, em) lane-dense store

    return kernel


# ----------------------------------------------------------------------------
# One-time weight re-layout (hoisted out of the per-call path).
# ----------------------------------------------------------------------------
def prepare_params(params, *, num_heads: int):
    w_qk, b_qk = params["w_qk"], params["b_qk"]        # (2*d_K, em), (2*d_K,)
    w_v, b_v = params["w_v"], params["b_v"]            # (d_V, em), (d_V,)
    w_p, b_p = params["w_p"], params["b_p"]            # (em, d_V), (em,)

    d_K = w_qk.shape[0] // 2
    d_V = w_v.shape[0]
    em = w_qk.shape[1]
    H = num_heads
    dh = d_K // H

    # einops 'b n (h d qk) -> qk b h n d'  =>  feature f = (h*dh + d)*2 + qk_idx
    w_qk_r = w_qk.reshape(H, dh, 2, em)
    b_qk_r = b_qk.reshape(H, dh, 2)
    wq = w_qk_r[:, :, 0, :].reshape(d_K, em)           # head-major Q rows
    wk = w_qk_r[:, :, 1, :].reshape(d_K, em)           # head-major K rows
    bq = b_qk_r[:, :, 0].reshape(d_K)
    bk = b_qk_r[:, :, 1].reshape(d_K)

    # Fused [Wq | Wk | Wv] as an (em, 2*d_K + d_V) right-multiplier.
    w_qkv = jnp.concatenate([wq, wk, w_v], axis=0).T
    b_qkv = jnp.concatenate([bq, bk, b_v]).reshape(1, 2 * d_K + d_V)

    return {
        "w_qkv": jnp.asarray(w_qkv, jnp.float32),
        "b_qkv": jnp.asarray(b_qkv, jnp.float32),
        "w_p_t": jnp.asarray(w_p.T, jnp.float32),      # (d_V, em)
        "b_p": jnp.asarray(b_p.reshape(1, em), jnp.float32),
        "d_K": d_K,
        "d_V": d_V,
    }


def multi_head_attention(x, prep, *, num_heads: int):
    """x: (B, N, em) float32. prep: output of prepare_params()."""
    B, N, em = x.shape
    d_K, d_V = prep["d_K"], prep["d_V"]
    kernel = _make_mha_kernel(num_heads, d_K, d_V)
    d_qkv = 2 * d_K + d_V

    return pl.pallas_call(
        kernel,
        out_shape=jax.ShapeDtypeStruct((B, N, em), jnp.float32),
        grid_spec=pl.GridSpec(
            grid=(B,),
            in_specs=[
                pl.BlockSpec((1, N, em), lambda b: (b, 0, 0)),    # x[b]
                pl.BlockSpec((em, d_qkv), lambda b: (0, 0)),      # fused W_qkv (resident)
                pl.BlockSpec((1, d_qkv), lambda b: (0, 0)),       # fused bias
                pl.BlockSpec((d_V, em), lambda b: (0, 0)),        # W_p^T (resident)
                pl.BlockSpec((1, em), lambda b: (0, 0)),          # b_p
            ],
            out_specs=pl.BlockSpec((1, N, em), lambda b: (b, 0, 0)),
        ),
        compiler_params=pltpu.CompilerParams(
            dimension_semantics=("parallel",)),
    )(x, prep["w_qkv"], prep["b_qkv"], prep["w_p_t"], prep["b_p"])
    # TODO(synk): for real ViT sizes (N~197, em~768) on v6e/v7x, cast MXU
    # operands to bf16 (keep f32 accumulation / f32 softmax) for full MXU rate.


# ----------------------------------------------------------------------------
# Pure-JAX reference mirroring the PyTorch forward exactly.
# ----------------------------------------------------------------------------
def _reference(x, params, *, num_heads):
    B, N, em = x.shape
    H = num_heads
    qk = x @ params["w_qk"].T + params["b_qk"]          # (B, N, 2*d_K)
    d_K = params["w_qk"].shape[0] // 2
    dh = d_K // H
    qk = qk.reshape(B, N, H, dh, 2)                     # '(h d qk)' factorization
    Q = jnp.transpose(qk[..., 0], (0, 2, 1, 3))         # (B, H, N, dh)
    K = jnp.transpose(qk[..., 1], (0, 2, 1, 3))
    v = x @ params["w_v"].T + params["b_v"]
    d_V = params["w_v"].shape[0]
    dhv = d_V // H
    V = jnp.transpose(v.reshape(B, N, H, dhv), (0, 2, 1, 3))
    s = jnp.einsum("bhqd,bhkd->bhqk", Q, K) / math.sqrt(dh)
    att = jax.nn.softmax(s, axis=-1)
    o = jnp.einsum("bhqk,bhkv->bhqv", att, V)
    o = jnp.transpose(o, (0, 2, 1, 3)).reshape(B, N, H * dhv)
    return o @ params["w_p"].T + params["b_p"]


if __name__ == "__main__":
    # Small config consistent with the module: em=32, d_K=d_V=32, 4 heads,
    # tokens N+1 = 9, batch = 2, drop_out = 0.
    B, N, em = 2, 9, 32
    d_K = d_V = 32
    num_heads = 4

    key = jax.random.PRNGKey(0)
    ks = jax.random.split(key, 7)
    scale = 0.05
    params = {
        "w_qk": scale * jax.random.normal(ks[0], (2 * d_K, em), jnp.float32),
        "b_qk": scale * jax.random.normal(ks[1], (2 * d_K,), jnp.float32),
        "w_v": scale * jax.random.normal(ks[2], (d_V, em), jnp.float32),
        "b_v": scale * jax.random.normal(ks[3], (d_V,), jnp.float32),
        "w_p": scale * jax.random.normal(ks[4], (em, d_V), jnp.float32),
        "b_p": scale * jax.random.normal(ks[5], (em,), jnp.float32),
    }
    x = jax.random.normal(ks[6], (B, N, em), jnp.float32)

    prep = prepare_params(params, num_heads=num_heads)      # one-time layout work
    out = multi_head_attention(x, prep, num_heads=num_heads)
    out = jax.block_until_ready(out)

    ref = _reference(x, params, num_heads=num_heads)
    np.testing.assert_allclose(np.asarray(out), np.asarray(ref),
                               rtol=2e-4, atol=2e-5)
    print("KERNEL_OK")
</pallas_src>

<mosaic_0001>
module attributes {stable_mosaic.version = 11 : i64} {
  func.func @kernel(%arg0: i32, %arg1: memref<1x9x32xf32, #tpu.memory_space<vmem>>, %arg2: memref<32x96xf32, #tpu.memory_space<vmem>>, %arg3: memref<1x96xf32, #tpu.memory_space<vmem>>, %arg4: memref<32x32xf32, #tpu.memory_space<vmem>>, %arg5: memref<1x32xf32, #tpu.memory_space<vmem>>, %arg6: memref<1x9x32xf32, #tpu.memory_space<vmem>>) attributes {dimension_semantics = [#tpu.dimension_semantics<parallel>], iteration_bounds = array<i64: 2>, scalar_prefetch = 0 : i64, scratch_operands = 0 : i64, tpu.core_type = #tpu.core_type<tc>, window_params = [{transform_indices = @transform_0, window_bounds = array<i64: 1, 9, 32>}, {pipeline_mode = #tpu.pipeline_mode<synchronous>, transform_indices = @transform_1, window_bounds = array<i64: 32, 96>}, {pipeline_mode = #tpu.pipeline_mode<synchronous>, transform_indices = @transform_2, window_bounds = array<i64: 1, 96>}, {pipeline_mode = #tpu.pipeline_mode<synchronous>, transform_indices = @transform_3, window_bounds = array<i64: 32, 32>}, {pipeline_mode = #tpu.pipeline_mode<synchronous>, transform_indices = @transform_4, window_bounds = array<i64: 1, 32>}, {transform_indices = @transform_5, window_bounds = array<i64: 1, 9, 32>}]} {
    %c0 = arith.constant 0 : index
    %c0_0 = arith.constant 0 : index
    %c0_1 = arith.constant 0 : index
    %0 = vector.load %arg1[%c0, %c0_0, %c0_1] : memref<1x9x32xf32, #tpu.memory_space<vmem>>, vector<1x9x32xf32>
    %1 = vector.shape_cast %0 : vector<1x9x32xf32> to vector<9x32xf32>
    %c0_2 = arith.constant 0 : index
    %c0_3 = arith.constant 0 : index
    %2 = vector.load %arg2[%c0_2, %c0_3] : memref<32x96xf32, #tpu.memory_space<vmem>>, vector<32x96xf32>
    %cst = arith.constant dense<0.000000e+00> : vector<9x96xf32>
    %3 = tpu.matmul %1, %2, %cst {dimension_numbers = #tpu.dot_dimension_numbers<[1], [0], [0], [1], [0, 0, 1, 1], [], []>} : vector<9x32xf32>, vector<32x96xf32>, vector<9x96xf32> -> vector<9x96xf32>
    %c0_4 = arith.constant 0 : index
    %c0_5 = arith.constant 0 : index
    %4 = vector.load %arg3[%c0_4, %c0_5] : memref<1x96xf32, #tpu.memory_space<vmem>>, vector<1x96xf32>
    %5 = vector.broadcast %4 : vector<1x96xf32> to vector<9x96xf32>
    %6 = arith.addf %3, %5 : vector<9x96xf32>
    %7 = vector.extract_strided_slice %6 {offsets = [0, 0], sizes = [9, 8], strides = [1, 1]} : vector<9x96xf32> to vector<9x8xf32>
    %8 = vector.extract_strided_slice %6 {offsets = [0, 32], sizes = [9, 8], strides = [1, 1]} : vector<9x96xf32> to vector<9x8xf32>
    %9 = vector.extract_strided_slice %6 {offsets = [0, 64], sizes = [9, 8], strides = [1, 1]} : vector<9x96xf32> to vector<9x8xf32>
    %10 = tpu.transpose %8, [1, 0] : vector<9x8xf32> -> vector<8x9xf32>
    %cst_6 = arith.constant dense<0.000000e+00> : vector<9x9xf32>
    %11 = tpu.matmul %7, %10, %cst_6 {dimension_numbers = #tpu.dot_dimension_numbers<[1], [0], [0], [1], [0, 0, 1, 1], [], []>} : vector<9x8xf32>, vector<8x9xf32>, vector<9x9xf32> -> vector<9x9xf32>
    %cst_7 = arith.constant 0.353553385 : f32
    %12 = vector.broadcast %cst_7 : f32 to vector<9x9xf32>
    %13 = arith.mulf %11, %12 : vector<9x9xf32>
    %cst_8 = arith.constant dense<0xFF800000> : vector<9xf32>
    %14 = vector.multi_reduction <maximumf>, %13, %cst_8 [1] : vector<9x9xf32> to vector<9xf32>
    %15 = vector.shape_cast %14 : vector<9xf32> to vector<9x1xf32>
    %16 = vector.broadcast %15 : vector<9x1xf32> to vector<9x9xf32>
    %17 = arith.subf %13, %16 : vector<9x9xf32>
    %18 = math.exp %17 : vector<9x9xf32>
    %cst_9 = arith.constant dense<0.000000e+00> : vector<9xf32>
    %19 = vector.multi_reduction <add>, %18, %cst_9 [1] : vector<9x9xf32> to vector<9xf32>
    %20 = vector.shape_cast %19 : vector<9xf32> to vector<9x1xf32>
    %21 = tpu.reciprocal %20 {approx = true} : vector<9x1xf32> -> vector<9x1xf32>
    %22 = arith.mulf %20, %21 : vector<9x1xf32>
    %cst_10 = arith.constant 2.000000e+00 : f32
    %23 = vector.broadcast %cst_10 : f32 to vector<9x1xf32>
    %24 = arith.subf %23, %22 : vector<9x1xf32>
    %25 = arith.mulf %21, %24 : vector<9x1xf32>
    %26 = vector.broadcast %25 : vector<9x1xf32> to vector<9x9xf32>
    %27 = arith.mulf %18, %26 : vector<9x9xf32>
    %cst_11 = arith.constant dense<0.000000e+00> : vector<9x8xf32>
    %28 = tpu.matmul %27, %9, %cst_11 {dimension_numbers = #tpu.dot_dimension_numbers<[1], [0], [0], [1], [0, 0, 1, 1], [], []>} : vector<9x9xf32>, vector<9x8xf32>, vector<9x8xf32> -> vector<9x8xf32>
    %29 = vector.extract_strided_slice %6 {offsets = [0, 8], sizes = [9, 8], strides = [1, 1]} : vector<9x96xf32> to vector<9x8xf32>
    %30 = vector.extract_strided_slice %6 {offsets = [0, 40], sizes = [9, 8], strides = [1, 1]} : vector<9x96xf32> to vector<9x8xf32>
    %31 = vector.extract_strided_slice %6 {offsets = [0, 72], sizes = [9, 8], strides = [1, 1]} : vector<9x96xf32> to vector<9x8xf32>
    %32 = tpu.transpose %30, [1, 0] : vector<9x8xf32> -> vector<8x9xf32>
    %cst_12 = arith.constant dense<0.000000e+00> : vector<9x9xf32>
    %33 = tpu.matmul %29, %32, %cst_12 {dimension_numbers = #tpu.dot_dimension_numbers<[1], [0], [0], [1], [0, 0, 1, 1], [], []>} : vector<9x8xf32>, vector<8x9xf32>, vector<9x9xf32> -> vector<9x9xf32>
    %cst_13 = arith.constant 0.353553385 : f32
    %34 = vector.broadcast %cst_13 : f32 to vector<9x9xf32>
    %35 = arith.mulf %33, %34 : vector<9x9xf32>
    %cst_14 = arith.constant dense<0xFF800000> : vector<9xf32>
    %36 = vector.multi_reduction <maximumf>, %35, %cst_14 [1] : vector<9x9xf32> to vector<9xf32>
    %37 = vector.shape_cast %36 : vector<9xf32> to vector<9x1xf32>
    %38 = vector.broadcast %37 : vector<9x1xf32> to vector<9x9xf32>
    %39 = arith.subf %35, %38 : vector<9x9xf32>
    %40 = math.exp %39 : vector<9x9xf32>
    %cst_15 = arith.constant dense<0.000000e+00> : vector<9xf32>
    %41 = vector.multi_reduction <add>, %40, %cst_15 [1] : vector<9x9xf32> to vector<9xf32>
    %42 = vector.shape_cast %41 : vector<9xf32> to vector<9x1xf32>
    %43 = tpu.reciprocal %42 {approx = true} : vector<9x1xf32> -> vector<9x1xf32>
    %44 = arith.mulf %42, %43 : vector<9x1xf32>
    %cst_16 = arith.constant 2.000000e+00 : f32
    %45 = vector.broadcast %cst_16 : f32 to vector<9x1xf32>
    %46 = arith.subf %45, %44 : vector<9x1xf32>
    %47 = arith.mulf %43, %46 : vector<9x1xf32>
    %48 = vector.broadcast %47 : vector<9x1xf32> to vector<9x9xf32>
    %49 = arith.mulf %40, %48 : vector<9x9xf32>
    %cst_17 = arith.constant dense<0.000000e+00> : vector<9x8xf32>
    %50 = tpu.matmul %49, %31, %cst_17 {dimension_numbers = #tpu.dot_dimension_numbers<[1], [0], [0], [1], [0, 0, 1, 1], [], []>} : vector<9x9xf32>, vector<9x8xf32>, vector<9x8xf32> -> vector<9x8xf32>
    %51 = vector.extract_strided_slice %6 {offsets = [0, 16], sizes = [9, 8], strides = [1, 1]} : vector<9x96xf32> to vector<9x8xf32>
    %52 = vector.extract_strided_slice %6 {offsets = [0, 48], sizes = [9, 8], strides = [1, 1]} : vector<9x96xf32> to vector<9x8xf32>
    %53 = vector.extract_strided_slice %6 {offsets = [0, 80], sizes = [9, 8], strides = [1, 1]} : vector<9x96xf32> to vector<9x8xf32>
    %54 = tpu.transpose %52, [1, 0] : vector<9x8xf32> -> vector<8x9xf32>
    %cst_18 = arith.constant dense<0.000000e+00> : vector<9x9xf32>
    %55 = tpu.matmul %51, %54, %cst_18 {dimension_numbers = #tpu.dot_dimension_numbers<[1], [0], [0], [1], [0, 0, 1, 1], [], []>} : vector<9x8xf32>, vector<8x9xf32>, vector<9x9xf32> -> vector<9x9xf32>
    %cst_19 = arith.constant 0.353553385 : f32
    %56 = vector.broadcast %cst_19 : f32 to vector<9x9xf32>
    %57 = arith.mulf %55, %56 : vector<9x9xf32>
    %cst_20 = arith.constant dense<0xFF800000> : vector<9xf32>
    %58 = vector.multi_reduction <maximumf>, %57, %cst_20 [1] : vector<9x9xf32> to vector<9xf32>
    %59 = vector.shape_cast %58 : vector<9xf32> to vector<9x1xf32>
    %60 = vector.broadcast %59 : vector<9x1xf32> to vector<9x9xf32>
    %61 = arith.subf %57, %60 : vector<9x9xf32>
    %62 = math.exp %61 : vector<9x9xf32>
    %cst_21 = arith.constant dense<0.000000e+00> : vector<9xf32>
    %63 = vector.multi_reduction <add>, %62, %cst_21 [1] : vector<9x9xf32> to vector<9xf32>
    %64 = vector.shape_cast %63 : vector<9xf32> to vector<9x1xf32>
    %65 = tpu.reciprocal %64 {approx = true} : vector<9x1xf32> -> vector<9x1xf32>
    %66 = arith.mulf %64, %65 : vector<9x1xf32>
    %cst_22 = arith.constant 2.000000e+00 : f32
    %67 = vector.broadcast %cst_22 : f32 to vector<9x1xf32>
    %68 = arith.subf %67, %66 : vector<9x1xf32>
    %69 = arith.mulf %65, %68 : vector<9x1xf32>
    %70 = vector.broadcast %69 : vector<9x1xf32> to vector<9x9xf32>
    %71 = arith.mulf %62, %70 : vector<9x9xf32>
    %cst_23 = arith.constant dense<0.000000e+00> : vector<9x8xf32>
    %72 = tpu.matmul %71, %53, %cst_23 {dimension_numbers = #tpu.dot_dimension_numbers<[1], [0], [0], [1], [0, 0, 1, 1], [], []>} : vector<9x9xf32>, vector<9x8xf32>, vector<9x8xf32> -> vector<9x8xf32>
    %73 = vector.extract_strided_slice %6 {offsets = [0, 24], sizes = [9, 8], strides = [1, 1]} : vector<9x96xf32> to vector<9x8xf32>
    %74 = vector.extract_strided_slice %6 {offsets = [0, 56], sizes = [9, 8], strides = [1, 1]} : vector<9x96xf32> to vector<9x8xf32>
    %75 = vector.extract_strided_slice %6 {offsets = [0, 88], sizes = [9, 8], strides = [1, 1]} : vector<9x96xf32> to vector<9x8xf32>
    %76 = tpu.transpose %74, [1, 0] : vector<9x8xf32> -> vector<8x9xf32>
    %cst_24 = arith.constant dense<0.000000e+00> : vector<9x9xf32>
    %77 = tpu.matmul %73, %76, %cst_24 {dimension_numbers = #tpu.dot_dimension_numbers<[1], [0], [0], [1], [0, 0, 1, 1], [], []>} : vector<9x8xf32>, vector<8x9xf32>, vector<9x9xf32> -> vector<9x9xf32>
    %cst_25 = arith.constant 0.353553385 : f32
    %78 = vector.broadcast %cst_25 : f32 to vector<9x9xf32>
    %79 = arith.mulf %77, %78 : vector<9x9xf32>
    %cst_26 = arith.constant dense<0xFF800000> : vector<9xf32>
    %80 = vector.multi_reduction <maximumf>, %79, %cst_26 [1] : vector<9x9xf32> to vector<9xf32>
    %81 = vector.shape_cast %80 : vector<9xf32> to vector<9x1xf32>
    %82 = vector.broadcast %81 : vector<9x1xf32> to vector<9x9xf32>
    %83 = arith.subf %79, %82 : vector<9x9xf32>
    %84 = math.exp %83 : vector<9x9xf32>
    %cst_27 = arith.constant dense<0.000000e+00> : vector<9xf32>
    %85 = vector.multi_reduction <add>, %84, %cst_27 [1] : vector<9x9xf32> to vector<9xf32>
    %86 = vector.shape_cast %85 : vector<9xf32> to vector<9x1xf32>
    %87 = tpu.reciprocal %86 {approx = true} : vector<9x1xf32> -> vector<9x1xf32>
    %88 = arith.mulf %86, %87 : vector<9x1xf32>
    %cst_28 = arith.constant 2.000000e+00 : f32
    %89 = vector.broadcast %cst_28 : f32 to vector<9x1xf32>
    %90 = arith.subf %89, %88 : vector<9x1xf32>
    %91 = arith.mulf %87, %90 : vector<9x1xf32>
    %92 = vector.broadcast %91 : vector<9x1xf32> to vector<9x9xf32>
    %93 = arith.mulf %84, %92 : vector<9x9xf32>
    %cst_29 = arith.constant dense<0.000000e+00> : vector<9x8xf32>
    %94 = tpu.matmul %93, %75, %cst_29 {dimension_numbers = #tpu.dot_dimension_numbers<[1], [0], [0], [1], [0, 0, 1, 1], [], []>} : vector<9x9xf32>, vector<9x8xf32>, vector<9x8xf32> -> vector<9x8xf32>
    %95 = tpu.concatenate %28, %50, %72, %94 in 1 : vector<9x8xf32>, vector<9x8xf32>, vector<9x8xf32>, vector<9x8xf32> -> vector<9x32xf32>
    %c0_30 = arith.constant 0 : index
    %c0_31 = arith.constant 0 : index
    %96 = vector.load %arg4[%c0_30, %c0_31] : memref<32x32xf32, #tpu.memory_space<vmem>>, vector<32x32xf32>
    %cst_32 = arith.constant dense<0.000000e+00> : vector<9x32xf32>
    %97 = tpu.matmul %95, %96, %cst_32 {dimension_numbers = #tpu.dot_dimension_numbers<[1], [0], [0], [1], [0, 0, 1, 1], [], []>} : vector<9x32xf32>, vector<32x32xf32>, vector<9x32xf32> -> vector<9x32xf32>
    %c0_33 = arith.constant 0 : index
    %c0_34 = arith.constant 0 : index
    %98 = vector.load %arg5[%c0_33, %c0_34] : memref<1x32xf32, #tpu.memory_space<vmem>>, vector<1x32xf32>
    %99 = vector.broadcast %98 : vector<1x32xf32> to vector<9x32xf32>
    %100 = arith.addf %97, %99 : vector<9x32xf32>
    %c0_35 = arith.constant 0 : index
    %c0_36 = arith.constant 0 : index
    %c0_37 = arith.constant 0 : index
    %101 = vector.load %arg6[%c0_35, %c0_36, %c0_37] : memref<1x9x32xf32, #tpu.memory_space<vmem>>, vector<1x9x32xf32>
    %102 = vector.shape_cast %101 : vector<1x9x32xf32> to vector<9x32xf32>
    %103 = vector.shape_cast %100 : vector<9x32xf32> to vector<1x9x32xf32>
    tpu.vector_store %arg6[%c0_35, %c0_36, %c0_37], %103 {strides = array<i32>} : memref<1x9x32xf32, #tpu.memory_space<vmem>>, vector<1x9x32xf32>,
    return
  }
  func.func @transform_0(%arg0: i32) -> (i32, i32, i32) {
    %c0_i32 = arith.constant 0 : i32
    %c0_i32_0 = arith.constant 0 : i32
    %c0_i32_1 = arith.constant 0 : i32
    return %arg0, %c0_i32, %c0_i32_0 : i32, i32, i32
  }
  func.func @transform_1(%arg0: i32) -> (i32, i32) {
    %c0_i32 = arith.constant 0 : i32
    %c0_i32_0 = arith.constant 0 : i32
    %c0_i32_1 = arith.constant 0 : i32
    return %c0_i32, %c0_i32_0 : i32, i32
  }
  func.func @transform_2(%arg0: i32) -> (i32, i32) {
    %c0_i32 = arith.constant 0 : i32
    %c0_i32_0 = arith.constant 0 : i32
    %c0_i32_1 = arith.constant 0 : i32
    return %c0_i32, %c0_i32_0 : i32, i32
  }
  func.func @transform_3(%arg0: i32) -> (i32, i32) {
    %c0_i32 = arith.constant 0 : i32
    %c0_i32_0 = arith.constant 0 : i32
    %c0_i32_1 = arith.constant 0 : i32
    return %c0_i32, %c0_i32_0 : i32, i32
  }
  func.func @transform_4(%arg0: i32) -> (i32, i32) {
    %c0_i32 = arith.constant 0 : i32
    %c0_i32_0 = arith.constant 0 : i32
    %c0_i32_1 = arith.constant 0 : i32
    return %c0_i32, %c0_i32_0 : i32, i32
  }
  func.func @transform_5(%arg0: i32) -> (i32, i32, i32) {
    %c0_i32 = arith.constant 0 : i32
    %c0_i32_0 = arith.constant 0 : i32
    %c0_i32_1 = arith.constant 0 : i32
    return %arg0, %c0_i32, %c0_i32_0 : i32, i32, i32
  }
}

</mosaic_0001>

<llo_original>
// kernel: tpu_custom_call.1
$region0: #{tpu_custom_call.1}
  #allocation0 [shape = 'u32[]', space=smem, size = 0x4, offset = 0x4, fixed_abs, tag = 'smem constant byte address 0x4 - core index']
  #allocation1 [shape = 'u32[144,128]{1,0:T(1,128)}', space=vmem, size = 0x12000, scoped, tag = 'internal scratch']
  %s0 = inlined_call_operand.vmem [shape: f32[2,9,32], index: 0, kind: input, shape index: {}]
  %s1 = inlined_call_operand.vmem [shape: f32[32,96], index: 1, kind: input, shape index: {}]
  %s2 = inlined_call_operand.vmem [shape: f32[1,96], index: 2, kind: input, shape index: {}]
  %s3 = inlined_call_operand.hbm [shape: f32[32,32], index: 3, kind: input, shape index: {}]
  %s4 = inlined_call_operand.vmem [shape: f32[1,32], index: 4, kind: input, shape index: {}]
  %s5 = inlined_call_operand.vmem [shape: f32[2,9,32], index: 5, kind: output, shape index: {}]
  %s6 = sld [smem:[#allocation0]]
  $region57: #{tpu_custom_call.1} parent=0
    _
  %s8 = ssub.s32 1, %s6
  %s9 = scalar_select 0, %s8, %s6
  $region1: #{tpu_custom_call.1} parent=0
    #allocation2 [shape = 'u8[16384]{0}', space=vmem, size = 0x4000, scoped, tag = 'input window, operand 3, single buffered']
    #allocation3 [shape = 's32[2]{0}', space=sflag, size = 0x8, scoped, tag = 'scoped memory for tpu_custom_call.1']
    %10 = vsyncpa [#allocation3], 0
    loop: start=0, step=1, limit=4
    $region2: #{tpu_custom_call.1} parent=1 // loop_pre_header
      _
    $region3: #{tpu_custom_call.1} parent=1 // loop_header
      %s12 = sphi 0, %s16
      %p13 = scmp.ge.s32.totalorder %s12, 4
      %s22 = sphi 0, %s24
      %s25 = sphi 0, %s22
      %s26 = sphi 0, %s25
      %s42 = sphi 0, %s26
      %s46 = sphi 0, %s46
      %s48 = sphi 0, %s46
      %s49 = sphi 0, %s48
      %s63 = sphi 0, %s49
      %s67 = sphi 0, %s67
      %s69 = sphi 0, %s67
      %s70 = sphi 0, %s69
      %s84 = sphi 0, %s70
      %s88 = sphi 0, %s88
      %s90 = sphi 0, %s88
      %s91 = sphi 0, %s90
      %s105 = sphi 0, %s91
      %s109 = sphi 0, %s109
      %s111 = sphi 0, %s109
      %s112 = sphi 0, %s111
      %s126 = sphi 0, %s112
      %s132 = sphi 0, %s134
      %s135 = sphi 0, %s132
      %s136 = sphi 0, %s135
      %s152 = sphi 0, %s136
    $region4: #{tpu_custom_call.1} parent=1 // loop_header_branch
      %15 = sbr.rel (%p13) target = $region8
    $region5: #{tpu_custom_call.1} parent=1 // loop_body
      %s17 = ssub.s32 %s12, 1
      %s18 = ssub.s32 %s12, 2
      %s19 = sadd.s32 %s12, 1
      %s20 = ssub.s32 %s12, %s19
      %p21 = scmp.eq.s32.totalorder %s20, 0
      %s23 = sadd.s32 %s22, 1
      %s24 = scalar_select %p21, %s22, %s23
      %p27 = pneg %p21
      %p28 = scmp.eq.s32.totalorder %s12, 1
      %p29 = por %p27, %p28
      %p30 = scmp.ne.s32.totalorder %s22, %s25
      %p31 = scmp.eq.s32.totalorder %s12, 0
      %p32 = por %p30, %p31
      %p33 = scmp.ne.s32.totalorder %s22, %s25
      %p34 = scmp.eq.s32.totalorder %s17, 1
      %p35 = por %p33, %p34
      %p36 = scmp.ne.s32.totalorder %s25, %s26
      %p37 = scmp.eq.s32.totalorder %s17, 0
      %p38 = por %p36, %p37
      %p39 = scmp.ne.s32.totalorder %s25, %s26
      %p40 = scmp.eq.s32.totalorder %s18, 1
      %p41 = por %p39, %p40
      %p43 = scmp.ne.s32.totalorder %s26, %s42
      %p44 = scmp.eq.s32.totalorder %s18, 0
      %p45 = por %p43, %p44
      %s47 = sadd.s32 %s46, 1
      %p50 = scmp.eq.s32.totalorder %s12, 1
      %p51 = scmp.ne.s32.totalorder %s46, %s48
      %p52 = scmp.eq.s32.totalorder %s12, 0
      %p53 = por %p51, %p52
      %p54 = scmp.ne.s32.totalorder %s46, %s48
      %p55 = scmp.eq.s32.totalorder %s17, 1
      %p56 = por %p54, %p55
      %p57 = scmp.ne.s32.totalorder %s48, %s49
      %p58 = scmp.eq.s32.totalorder %s17, 0
      %p59 = por %p57, %p58
      %p60 = scmp.ne.s32.totalorder %s48, %s49
      %p61 = scmp.eq.s32.totalorder %s18, 1
      %p62 = por %p60, %p61
      %p64 = scmp.ne.s32.totalorder %s49, %s63
      %p65 = scmp.eq.s32.totalorder %s18, 0
      %p66 = por %p64, %p65
      %s68 = sadd.s32 %s67, 1
      %p71 = scmp.eq.s32.totalorder %s12, 1
      %p72 = scmp.ne.s32.totalorder %s67, %s69
      %p73 = scmp.eq.s32.totalorder %s12, 0
      %p74 = por %p72, %p73
      %p75 = scmp.ne.s32.totalorder %s67, %s69
      %p76 = scmp.eq.s32.totalorder %s17, 1
      %p77 = por %p75, %p76
      %p78 = scmp.ne.s32.totalorder %s69, %s70
      %p79 = scmp.eq.s32.totalorder %s17, 0
      %p80 = por %p78, %p79
      %p81 = scmp.ne.s32.totalorder %s69, %s70
      %p82 = scmp.eq.s32.totalorder %s18, 1
      %p83 = por %p81, %p82
      %p85 = scmp.ne.s32.totalorder %s70, %s84
      %p86 = scmp.eq.s32.totalorder %s18, 0
      %p87 = por %p85, %p86
      %s89 = sadd.s32 %s88, 1
      %p92 = scmp.eq.s32.totalorder %s12, 1
      %p93 = scmp.ne.s32.totalorder %s88, %s90
      %p94 = scmp.eq.s32.totalorder %s12, 0
      %p95 = por %p93, %p94
      %p96 = scmp.ne.s32.totalorder %s88, %s90
      %p97 = scmp.eq.s32.totalorder %s17, 1
      %p98 = por %p96, %p97
      %p99 = scmp.ne.s32.totalorder %s90, %s91
      %p100 = scmp.eq.s32.totalorder %s17, 0
      %p101 = por %p99, %p100
      %p102 = scmp.ne.s32.totalorder %s90, %s91
      %p103 = scmp.eq.s32.totalorder %s18, 1
      %p104 = por %p102, %p103
      %p106 = scmp.ne.s32.totalorder %s91, %s105
      %p107 = scmp.eq.s32.totalorder %s18, 0
      %p108 = por %p106, %p107
      %s110 = sadd.s32 %s109, 1
      %p113 = scmp.eq.s32.totalorder %s12, 1
      %p114 = scmp.ne.s32.totalorder %s109, %s111
      %p115 = scmp.eq.s32.totalorder %s12, 0
      %p116 = por %p114, %p115
      %p117 = scmp.ne.s32.totalorder %s109, %s111
      %p118 = scmp.eq.s32.totalorder %s17, 1
      %p119 = por %p117, %p118
      %p120 = scmp.ne.s32.totalorder %s111, %s112
      %p121 = scmp.eq.s32.totalorder %s17, 0
      %p122 = por %p120, %p121
      %p123 = scmp.ne.s32.totalorder %s111, %s112
      %p124 = scmp.eq.s32.totalorder %s18, 1
      %p125 = por %p123, %p124
      %p127 = scmp.ne.s32.totalorder %s112, %s126
      %p128 = scmp.eq.s32.totalorder %s18, 0
      %p129 = por %p127, %p128
      %s130 = ssub.s32 %s12, %s19
      %p131 = scmp.eq.s32.totalorder %s130, 0
      %s133 = sadd.s32 %s132, 1
      %s134 = scalar_select %p131, %s132, %s133
      %p137 = pneg %p131
      %p138 = scmp.eq.s32.totalorder %s12, 1
      %p139 = por %p137, %p138
      %p140 = scmp.ne.s32.totalorder %s132, %s135
      %p141 = scmp.eq.s32.totalorder %s12, 0
      %p142 = por %p140, %p141
      %p143 = scmp.ne.s32.totalorder %s132, %s135
      %p144 = scmp.eq.s32.totalorder %s17, 1
      %p145 = por %p143, %p144
      %p146 = scmp.ne.s32.totalorder %s135, %s136
      %p147 = scmp.eq.s32.totalorder %s17, 0
      %p148 = por %p146, %p147
      %p149 = scmp.ne.s32.totalorder %s135, %s136
      %p150 = scmp.eq.s32.totalorder %s18, 1
      %p151 = por %p149, %p150
      %p153 = scmp.ne.s32.totalorder %s136, %s152
      %p154 = scmp.eq.s32.totalorder %s18, 0
      %p155 = por %p153, %p154
      %p156 = scmp.le.s32.totalorder 1, %s12
      %p157 = scmp.lt.s32.totalorder %s12, 3
      %p158 = pnand %p156, %p157
      %p159 = pneg %p158
      // Predicated region
      $region9: #{tpu_custom_call.1} parent=5 // pred_check
        _
      $region10: #{tpu_custom_call.1} parent=5 // pred_check_branch
        %161 = sbr.rel (%p158) target = $region12
      $region11: #{tpu_custom_call.1} parent=5 // pred_region
        %s162 = ssub.s32 %s12, 1
        // Predicated region
        $region13: #{tpu_custom_call.1} parent=11 // pred_check
          %p163 = pneg %p59
        $region14: #{tpu_custom_call.1} parent=11 // pred_check_branch
          %165 = sbr.rel (%p163) target = $region16
        $region15: #{tpu_custom_call.1} parent=11 // pred_region
          _
        $region16: #{tpu_custom_call.1} parent=11 // pred_fallthru
          _
        // Predicated region
        $region17: #{tpu_custom_call.1} parent=11 // pred_check
          %p166 = pneg %p80
        $region18: #{tpu_custom_call.1} parent=11 // pred_check_branch
          %168 = sbr.rel (%p166) target = $region20
        $region19: #{tpu_custom_call.1} parent=11 // pred_region
          _
        $region20: #{tpu_custom_call.1} parent=11 // pred_fallthru
          _
        // Predicated region
        $region21: #{tpu_custom_call.1} parent=11 // pred_check
          %p169 = pneg %p101
        $region22: #{tpu_custom_call.1} parent=11 // pred_check_branch
          %171 = sbr.rel (%p169) target = $region24
        $region23: #{tpu_custom_call.1} parent=11 // pred_region
          %s173 = ssub.s32 512, 512
          %174 = vsyncadd [#allocation3], %s173
          %s175 = sshll.u32 [#allocation2], 4
          %s176 = int_to_ptr.vmem [resolvable:$true] %s175
          %181 = dma.hbm_to_vmem [thread:$0]  %s3, 512, %s176, [#allocation3], 128, 128, 8
        $region24: #{tpu_custom_call.1} parent=11 // pred_fallthru
          _
        // Predicated region
        $region25: #{tpu_custom_call.1} parent=11 // pred_check
          %p182 = pneg %p122
        $region26: #{tpu_custom_call.1} parent=11 // pred_check_branch
          %184 = sbr.rel (%p182) target = $region28
        $region27: #{tpu_custom_call.1} parent=11 // pred_region
          _
        $region28: #{tpu_custom_call.1} parent=11 // pred_fallthru
          _
      $region12: #{tpu_custom_call.1} parent=5 // pred_fallthru
        _
      %p185 = scmp.lt.s32.totalorder %s12, 2
      // Predicated region
      $region29: #{tpu_custom_call.1} parent=5 // pred_check
        %p186 = pneg %p185
      $region30: #{tpu_custom_call.1} parent=5 // pred_check_branch
        %188 = sbr.rel (%p186) target = $region32
      $region31: #{tpu_custom_call.1} parent=5 // pred_region
        // Predicated region
        $region33: #{tpu_custom_call.1} parent=31 // pred_check
          %p189 = pneg %p32
        $region34: #{tpu_custom_call.1} parent=31 // pred_check_branch
          %191 = sbr.rel (%p189) target = $region36
        $region35: #{tpu_custom_call.1} parent=31 // pred_region
          %p192 = scmp.lt.s32.totalorder %s12, 1
          %s193 = scalar_select %p192, %s12, 1
          %s194 = smul.addr %s193, 2
          %s195 = smul.addr %s194, 8
          %s196 = scalar_lea.vmem %s0, %s195
        $region36: #{tpu_custom_call.1} parent=31 // pred_fallthru
          _
      $region32: #{tpu_custom_call.1} parent=5 // pred_fallthru
        _
      %p197 = scmp.le.s32.totalorder 1, %s12
      %p198 = scmp.lt.s32.totalorder %s12, 3
      %p199 = pnand %p197, %p198
      %p200 = pneg %p199
      // Predicated region
      $region37: #{tpu_custom_call.1} parent=5 // pred_check
        _
      $region38: #{tpu_custom_call.1} parent=5 // pred_check_branch
        %202 = sbr.rel (%p199) target = $region40
      $region39: #{tpu_custom_call.1} parent=5 // pred_region
        %s203 = ssub.s32 %s12, 1
        // Predicated region
        $region41: #{tpu_custom_call.1} parent=39 // pred_check
          %p204 = pneg %p101
        $region42: #{tpu_custom_call.1} parent=39 // pred_check_branch
          %206 = sbr.rel (%p204) target = $region44
        $region43: #{tpu_custom_call.1} parent=39 // pred_region
          %207 = dma.done [#allocation3], 512
        $region44: #{tpu_custom_call.1} parent=39 // pred_fallthru
          _
        %p208 = scmp.lt.s32.totalorder %s17, 1
        %s209 = scalar_select %p208, %s17, 1
        %s210 = smul.addr %s209, 2
        %s211 = smul.addr %s210, 8
        %s212 = scalar_lea.vmem %s0, %s211
        %p213 = pneg %p38
        %p214 = pneg %p35
        %p215 = pneg %p59
        %p216 = pneg %p56
        %p217 = pneg %p80
        %p218 = pneg %p77
        %p219 = pneg %p101
        %p220 = pneg %p98
        %p221 = pneg %p122
        %p222 = pneg %p119
        %p223 = pneg %p148
        %p224 = pneg %p145
        %p225 = scmp.lt.s32.totalorder %s17, 1
        %s226 = scalar_select %p225, %s17, 1
        %s227 = smul.addr %s226, 2
        %s228 = smul.addr %s227, 8
        %s229 = scalar_lea.vmem %s5, %s228
        %p230 = scmp.lt.s32.totalorder %s17, 1
        %s231 = scalar_select %p230, %s17, 1
        %s232 = smul.addr %s231, 2
        %s233 = smul.addr %s232, 8
        %s234 = scalar_lea.vmem %s0, %s233
        %p235 = scmp.lt.s32.totalorder %s17, 1
        %s236 = scalar_select %p235, %s17, 1
        %s237 = smul.addr %s236, 2
        %s238 = smul.addr %s237, 8
        %s239 = scalar_lea.vmem %s5, %s238
        %v240 = vld [vmem:[%s234] sm:$0xff]
        %v241 = vld [vmem:[%s234 + $0x8] sm:$0x1]
        %v242 = vld [vmem:[%s1] sm:$0xff]
        %v243 = vld [vmem:[%s1 + $0x8] sm:$0xff]
        %v244 = vld [vmem:[%s1 + $0x10] sm:$0xff]
        %v245 = vld [vmem:[%s1 + $0x18] sm:$0xff]
        %v246 = vld [vmem:[%s2] sm:$0x1]
        %v248 = vlaneseq
        %v249 = vshrl.u32 %v248, 7
        %v250 = vsub.s32 0, %v249
        %v251 = vrot.slane %v246, %v250
        %vm253 = vcmask 261120
        %v255 = vsel %vm253, %v240, 0
        %v258 = vsel %vm253, %v241, 0
        %260 = vmatprep.subr.mxu0 0.0
        %261 = vmatpush1.msra.mxu0 %v242
        %262 = vmatprep.subr.mxu0 0.0
        %263 = vmatpush1.msra.mxu0 %v243
        %264 = vmatprep.subr.mxu0 0.0
        %265 = vmatpush1.msra.mxu0 %v244
        %266 = vmatprep.subr.mxu0 0.0
        %267 = vmatpush1.msra.mxu0 %v245
        %268 = vmatprep.subr.mxu0 0.0
        %269 = vmatpush1.msra.mxu0 0.0
        %270 = vmatprep.subr.mxu0 0.0
        %271 = vmatpush1.msra.mxu0 0.0
        %272 = vmatprep.subr.mxu0 0.0
        %273 = vmatpush1.msra.mxu0 0.0
        %274 = vmatprep.subr.mxu0 0.0
        %275 = vmatpush1.msra.mxu0 0.0
        %276 = vmatprep.subr.mxu0 0.0
        %277 = vmatpush1.msra.mxu0 0.0
        %278 = vmatprep.subr.mxu0 0.0
        %279 = vmatpush1.msra.mxu0 0.0
        %280 = vmatprep.subr.mxu0 0.0
        %281 = vmatpush1.msra.mxu0 0.0
        %282 = vmatprep.subr.mxu0 0.0
        %283 = vmatpush1.msra.mxu0 0.0
        %284 = vmatprep.subr.mxu0 0.0
        %285 = vmatpush1.msra.mxu0 0.0
        %286 = vmatprep.subr.mxu0 0.0
        %287 = vmatpush1.msra.mxu0 0.0
        %288 = vmatprep.subr.mxu0 0.0
        %289 = vmatpush1.msra.mxu0 0.0
        %290 = vmatprep.subr.mxu0 0.0
        %291 = vmatpush1.msra.mxu0 0.0
        %292 = vmatprep.subr.mxu0 0.0
        %293 = vmatpush1.msra.mxu0 0.0
        %294 = vmatprep.subr.mxu0 0.0
        %295 = vmatpush1.msra.mxu0 0.0
        %296 = vmatprep.subr.mxu0 0.0
        %297 = vmatpush1.msra.mxu0 0.0
        %298 = vmatprep.subr.mxu0 0.0
        %299 = vmatpush1.msra.mxu0 0.0
        %300 = vmatprep.subr.mxu0 0.0
        %301 = vmatpush1.msra.mxu0 0.0
        %302 = vmatprep.subr.mxu0 0.0
        %303 = vmatpush1.msra.mxu0 0.0
        %304 = vmatprep.subr.mxu0 0.0
        %305 = vmatpush1.msra.mxu0 0.0
        %306 = vmatprep.subr.mxu0 0.0
        %307 = vmatpush1.msra.mxu0 0.0
        %308 = vmatprep.subr.mxu0 0.0
        %309 = vmatpush1.msra.mxu0 0.0
        %310 = vmatprep.subr.mxu0 0.0
        %311 = vmatpush1.msra.mxu0 0.0
        %312 = vmatprep.subr.mxu0 0.0
        %313 = vmatpush1.msra.mxu0 0.0
        %314 = vmatprep.subr.mxu0 0.0
        %315 = vmatpush1.msra.mxu0 0.0
        %316 = vmatprep.subr.mxu0 0.0
        %317 = vmatpush1.msra.mxu0 0.0
        %318 = vmatprep.subr.mxu0 0.0
        %319 = vmatpush1.msra.mxu0 0.0
        %320 = vmatprep.subr.mxu0 0.0
        %321 = vmatpush1.msra.mxu0 0.0
        %322 = vmatprep.subr.mxu0 0.0
        %323 = vmatpush1.msra.mxu0 0.0
        %324 = vmatprep.mubr.f32.mxu0 0.0
        %325 = vmatmul.mubr.f32.gmra.mrb[0].mxu0 %v255
        %v326 = vpop.f32.mrb[0].mxu0
        %v327 = vadd.f32 %v251, %v326
        %v328 = vpop.f32.mrb[0].mxu0
        %329 = vmatprep.mubr.f32.mxu0 0.0
        %330 = vmatmul.mubr.f32.gmra.mrb[0].mxu0 %v258
        %v331 = vpop.f32.mrb[0].mxu0
        %v332 = vadd.f32 %v251, %v331
        %v333 = vpop.f32.mrb[0].mxu0
        %334 = vdwg.mxu0
        %337 = vrot.lane.b32.xlu0 %v327, 96
        %v338 = vpop.permute.xlu0 %337
        %339 = vrot.lane.b32.xlu0 %v332, 96
        %v340 = vpop.permute.xlu0 %339
        %vm341 = vcmask 64512
        %v342 = vsel %vm341, %v327, 0
        %v344 = vsel %vm341, %v332, 0
        %v346 = vsel %vm341, %v338, 0
        %v348 = vsel %vm341, %v340, 0
        %350 = vmatprep.subr.mxu0 0.0
        %351 = vmatpush1.xpose.msra.mxu0 %v346
        %352 = vmatprep.subr.mxu0 0.0
        %353 = vmatpush1.xpose.msra.mxu0 %v348
        %354 = vmatprep.subr.mxu0 0.0
        %355 = vmatpush1.xpose.msra.mxu0 0.0
        %356 = vmatprep.subr.mxu0 0.0
        %357 = vmatpush1.xpose.msra.mxu0 0.0
        %358 = vmatprep.subr.mxu0 0.0
        %359 = vmatpush1.xpose.msra.mxu0 0.0
        %360 = vmatprep.subr.mxu0 0.0
        %361 = vmatpush1.xpose.msra.mxu0 0.0
        %362 = vmatprep.subr.mxu0 0.0
        %363 = vmatpush1.xpose.msra.mxu0 0.0
        %364 = vmatprep.subr.mxu0 0.0
        %365 = vmatpush1.xpose.msra.mxu0 0.0
        %366 = vmatprep.subr.mxu0 0.0
        %367 = vmatpush1.xpose.msra.mxu0 0.0
        %368 = vmatprep.subr.mxu0 0.0
        %369 = vmatpush1.xpose.msra.mxu0 0.0
        %370 = vmatprep.subr.mxu0 0.0
        %371 = vmatpush1.xpose.msra.mxu0 0.0
        %372 = vmatprep.subr.mxu0 0.0
        %373 = vmatpush1.xpose.msra.mxu0 0.0
        %374 = vmatprep.subr.mxu0 0.0
        %375 = vmatpush1.xpose.msra.mxu0 0.0
        %376 = vmatprep.subr.mxu0 0.0
        %377 = vmatpush1.xpose.msra.mxu0 0.0
        %378 = vmatprep.subr.mxu0 0.0
        %379 = vmatpush1.xpose.msra.mxu0 0.0
        %380 = vmatprep.subr.mxu0 0.0
        %381 = vmatpush1.xpose.msra.mxu0 0.0
        %382 = vmatprep.subr.mxu0 0.0
        %383 = vmatpush1.xpose.msra.mxu0 0.0
        %384 = vmatprep.subr.mxu0 0.0
        %385 = vmatpush1.xpose.msra.mxu0 0.0
        %386 = vmatprep.subr.mxu0 0.0
        %387 = vmatpush1.xpose.msra.mxu0 0.0
        %388 = vmatprep.subr.mxu0 0.0
        %389 = vmatpush1.xpose.msra.mxu0 0.0
        %390 = vmatprep.subr.mxu0 0.0
        %391 = vmatpush1.xpose.msra.mxu0 0.0
        %392 = vmatprep.subr.mxu0 0.0
        %393 = vmatpush1.xpose.msra.mxu0 0.0
        %394 = vmatprep.subr.mxu0 0.0
        %395 = vmatpush1.xpose.msra.mxu0 0.0
        %396 = vmatprep.subr.mxu0 0.0
        %397 = vmatpush1.xpose.msra.mxu0 0.0
        %398 = vmatprep.subr.mxu0 0.0
        %399 = vmatpush1.xpose.msra.mxu0 0.0
        %400 = vmatprep.subr.mxu0 0.0
        %401 = vmatpush1.xpose.msra.mxu0 0.0
        %402 = vmatprep.subr.mxu0 0.0
        %403 = vmatpush1.xpose.msra.mxu0 0.0
        %404 = vmatprep.subr.mxu0 0.0
        %405 = vmatpush1.xpose.msra.mxu0 0.0
        %406 = vmatprep.subr.mxu0 0.0
        %407 = vmatpush1.xpose.msra.mxu0 0.0
        %408 = vmatprep.subr.mxu0 0.0
        %409 = vmatpush1.xpose.msra.mxu0 0.0
        %410 = vmatprep.subr.mxu0 0.0
        %411 = vmatpush1.xpose.msra.mxu0 0.0
        %412 = vmatprep.subr.mxu0 0.0
        %413 = vmatpush1.xpose.msra.mxu0 0.0
        %414 = vmatprep.mubr.f32.mxu0 0.0
        %415 = vmatmul.mubr.f32.gmra.mrb[0].mxu0 %v342
        %v416 = vpop.f32.mrb[0].mxu0
        %v417 = vadd.f32 0.0, %v416
        %v418 = vpop.f32.mrb[0].mxu0
        %419 = vmatprep.mubr.f32.mxu0 0.0
        %420 = vmatmul.mubr.f32.gmra.mrb[0].mxu0 %v344
        %v421 = vpop.f32.mrb[0].mxu0
        %v422 = vadd.f32 0.0, %v421
        %v423 = vpop.f32.mrb[0].mxu0
        %424 = vdwg.mxu0
        %v425 = vmul.f32 %v417, 0.35355338
        %v426 = vmul.f32 %v422, 0.35355338
        %vm427 = vcmask 72704
        %v428 = vsel %vm427, %v425, -inf
        %429 = vmax.xlane.f32.xlu0 %v428
        %v430 = vpop.xlane.xlu0 %429
        %vm431 = vcmask 65536
        %v432 = vsel %vm431, %v426, -inf
        %433 = vmax.xlane.f32.xlu0 %v432
        %v434 = vpop.xlane.xlu0 %433
        %v435 = vsub.f32 %v425, %v430
        %v436 = vsub.f32 %v426, %v434
        %v437 = vmul.f32 %v435, 1.442695
        %v438 = vpow.pop %v437
        %v439 = vmul.f32 %v436, 1.442695
        %v440 = vpow.pop %v439
        %v441 = vsel %vm427, %v438, 0.0
        %442 = vadd.xlane.f32.xlu0 %v441
        %v443 = vpop.xlane.xlu0 %442
        %v444 = vsel %vm431, %v440, 0.0
        %445 = vadd.xlane.f32.xlu0 %v444
        %v446 = vpop.xlane.xlu0 %445
        %v447 = vrcp.pop %v443
        %v448 = vrcp.pop %v446
        %v449 = vmul.f32 %v443, %v447
        %v450 = vmul.f32 %v446, %v448
        %v451 = vsub.f32 2.0, %v449
        %v452 = vsub.f32 2.0, %v450
        %v453 = vmul.f32 %v447, %v451
        %v454 = vmul.f32 %v448, %v452
        %v455 = vmul.f32 %v438, %v453
        %v456 = vmul.f32 %v440, %v454
        %457 = vrot.lane.b32.xlu0 %v327, 64
        %v458 = vpop.permute.xlu0 %457
        %459 = vrot.lane.b32.xlu0 %v332, 64
        %v460 = vpop.permute.xlu0 %459
        %v463 = vsel %vm427, %v455, 0
        %v466 = vsel %vm427, %v456, 0
        %vm468 = vcmask 1040384
        %v469 = vsel %vm468, %v460, 0
        %471 = vmatprep.subr.mxu0 0.0
        %472 = vmatpush1.msra.mxu0 %v458
        %473 = vmatprep.subr.mxu0 0.0
        %474 = vmatpush1.msra.mxu0 %v469
        %475 = vmatprep.subr.mxu0 0.0
        %476 = vmatpush1.msra.mxu0 0.0
        %477 = vmatprep.subr.mxu0 0.0
        %478 = vmatpush1.msra.mxu0 0.0
        %479 = vmatprep.subr.mxu0 0.0
        %480 = vmatpush1.msra.mxu0 0.0
        %481 = vmatprep.subr.mxu0 0.0
        %482 = vmatpush1.msra.mxu0 0.0
        %483 = vmatprep.subr.mxu0 0.0
        %484 = vmatpush1.msra.mxu0 0.0
        %485 = vmatprep.subr.mxu0 0.0
        %486 = vmatpush1.msra.mxu0 0.0
        %487 = vmatprep.subr.mxu0 0.0
        %488 = vmatpush1.msra.mxu0 0.0
        %489 = vmatprep.subr.mxu0 0.0
        %490 = vmatpush1.msra.mxu0 0.0
        %491 = vmatprep.subr.mxu0 0.0
        %492 = vmatpush1.msra.mxu0 0.0
        %493 = vmatprep.subr.mxu0 0.0
        %494 = vmatpush1.msra.mxu0 0.0
        %495 = vmatprep.subr.mxu0 0.0
        %496 = vmatpush1.msra.mxu0 0.0
        %497 = vmatprep.subr.mxu0 0.0
        %498 = vmatpush1.msra.mxu0 0.0
        %499 = vmatprep.subr.mxu0 0.0
        %500 = vmatpush1.msra.mxu0 0.0
        %501 = vmatprep.subr.mxu0 0.0
        %502 = vmatpush1.msra.mxu0 0.0
        %503 = vmatprep.subr.mxu0 0.0
        %504 = vmatpush1.msra.mxu0 0.0
        %505 = vmatprep.subr.mxu0 0.0
        %506 = vmatpush1.msra.mxu0 0.0
        %507 = vmatprep.subr.mxu0 0.0
        %508 = vmatpush1.msra.mxu0 0.0
        %509 = vmatprep.subr.mxu0 0.0
        %510 = vmatpush1.msra.mxu0 0.0
        %511 = vmatprep.subr.mxu0 0.0
        %512 = vmatpush1.msra.mxu0 0.0
        %513 = vmatprep.subr.mxu0 0.0
        %514 = vmatpush1.msra.mxu0 0.0
        %515 = vmatprep.subr.mxu0 0.0
        %516 = vmatpush1.msra.mxu0 0.0
        %517 = vmatprep.subr.mxu0 0.0
        %518 = vmatpush1.msra.mxu0 0.0
        %519 = vmatprep.subr.mxu0 0.0
        %520 = vmatpush1.msra.mxu0 0.0
        %521 = vmatprep.subr.mxu0 0.0
        %522 = vmatpush1.msra.mxu0 0.0
        %523 = vmatprep.subr.mxu0 0.0
        %524 = vmatpush1.msra.mxu0 0.0
        %525 = vmatprep.subr.mxu0 0.0
        %526 = vmatpush1.msra.mxu0 0.0
        %527 = vmatprep.subr.mxu0 0.0
        %528 = vmatpush1.msra.mxu0 0.0
        %529 = vmatprep.subr.mxu0 0.0
        %530 = vmatpush1.msra.mxu0 0.0
        %531 = vmatprep.subr.mxu0 0.0
        %532 = vmatpush1.msra.mxu0 0.0
        %533 = vmatprep.subr.mxu0 0.0
        %534 = vmatpush1.msra.mxu0 0.0
        %535 = vmatprep.mubr.f32.mxu0 0.0
        %536 = vmatmul.mubr.f32.gmra.mrb[0].mxu0 %v463
        %v537 = vpop.f32.mrb[0].mxu0
        %v538 = vadd.f32 0.0, %v537
        %v539 = vpop.f32.mrb[0].mxu0
        %540 = vmatprep.mubr.f32.mxu0 0.0
        %541 = vmatmul.mubr.f32.gmra.mrb[0].mxu0 %v466
        %v542 = vpop.f32.mrb[0].mxu0
        %v543 = vadd.f32 0.0, %v542
        %v544 = vpop.f32.mrb[0].mxu0
        %545 = vdwg.mxu0
        %546 = vrot.lane.b32.xlu0 %v327, 120
        %v547 = vpop.permute.xlu0 %546
        %548 = vrot.lane.b32.xlu0 %v332, 120
        %v549 = vpop.permute.xlu0 %548
        %550 = vrot.lane.b32.xlu0 %v327, 88
        %v551 = vpop.permute.xlu0 %550
        %552 = vrot.lane.b32.xlu0 %v332, 88
        %v553 = vpop.permute.xlu0 %552
        %v554 = vsel %vm341, %v547, 0
        %v556 = vsel %vm341, %v549, 0
        %v558 = vsel %vm341, %v551, 0
        %v560 = vsel %vm341, %v553, 0
        %562 = vmatprep.subr.mxu0 0.0
        %563 = vmatpush1.xpose.msra.mxu0 %v558
        %564 = vmatprep.subr.mxu0 0.0
        %565 = vmatpush1.xpose.msra.mxu0 %v560
        %566 = vmatprep.subr.mxu0 0.0
        %567 = vmatpush1.xpose.msra.mxu0 0.0
        %568 = vmatprep.subr.mxu0 0.0
        %569 = vmatpush1.xpose.msra.mxu0 0.0
        %570 = vmatprep.subr.mxu0 0.0
        %571 = vmatpush1.xpose.msra.mxu0 0.0
        %572 = vmatprep.subr.mxu0 0.0
        %573 = vmatpush1.xpose.msra.mxu0 0.0
        %574 = vmatprep.subr.mxu0 0.0
        %575 = vmatpush1.xpose.msra.mxu0 0.0
        %576 = vmatprep.subr.mxu0 0.0
        %577 = vmatpush1.xpose.msra.mxu0 0.0
        %578 = vmatprep.subr.mxu0 0.0
        %579 = vmatpush1.xpose.msra.mxu0 0.0
        %580 = vmatprep.subr.mxu0 0.0
        %581 = vmatpush1.xpose.msra.mxu0 0.0
        %582 = vmatprep.subr.mxu0 0.0
        %583 = vmatpush1.xpose.msra.mxu0 0.0
        %584 = vmatprep.subr.mxu0 0.0
        %585 = vmatpush1.xpose.msra.mxu0 0.0
        %586 = vmatprep.subr.mxu0 0.0
        %587 = vmatpush1.xpose.msra.mxu0 0.0
        %588 = vmatprep.subr.mxu0 0.0
        %589 = vmatpush1.xpose.msra.mxu0 0.0
        %590 = vmatprep.subr.mxu0 0.0
        %591 = vmatpush1.xpose.msra.mxu0 0.0
        %592 = vmatprep.subr.mxu0 0.0
        %593 = vmatpush1.xpose.msra.mxu0 0.0
        %594 = vmatprep.subr.mxu0 0.0
        %595 = vmatpush1.xpose.msra.mxu0 0.0
        %596 = vmatprep.subr.mxu0 0.0
        %597 = vmatpush1.xpose.msra.mxu0 0.0
        %598 = vmatprep.subr.mxu0 0.0
        %599 = vmatpush1.xpose.msra.mxu0 0.0
        %600 = vmatprep.subr.mxu0 0.0
        %601 = vmatpush1.xpose.msra.mxu0 0.0
        %602 = vmatprep.subr.mxu0 0.0
        %603 = vmatpush1.xpose.msra.mxu0 0.0
        %604 = vmatprep.subr.mxu0 0.0
        %605 = vmatpush1.xpose.msra.mxu0 0.0
        %606 = vmatprep.subr.mxu0 0.0
        %607 = vmatpush1.xpose.msra.mxu0 0.0
        %608 = vmatprep.subr.mxu0 0.0
        %609 = vmatpush1.xpose.msra.mxu0 0.0
        %610 = vmatprep.subr.mxu0 0.0
        %611 = vmatpush1.xpose.msra.mxu0 0.0
        %612 = vmatprep.subr.mxu0 0.0
        %613 = vmatpush1.xpose.msra.mxu0 0.0
        %614 = vmatprep.subr.mxu0 0.0
        %615 = vmatpush1.xpose.msra.mxu0 0.0
        %616 = vmatprep.subr.mxu0 0.0
        %617 = vmatpush1.xpose.msra.mxu0 0.0
        %618 = vmatprep.subr.mxu0 0.0
        %619 = vmatpush1.xpose.msra.mxu0 0.0
        %620 = vmatprep.subr.mxu0 0.0
        %621 = vmatpush1.xpose.msra.mxu0 0.0
        %622 = vmatprep.subr.mxu0 0.0
        %623 = vmatpush1.xpose.msra.mxu0 0.0
        %624 = vmatprep.subr.mxu0 0.0
        %625 = vmatpush1.xpose.msra.mxu0 0.0
        %626 = vmatprep.mubr.f32.mxu0 0.0
        %627 = vmatmul.mubr.f32.gmra.mrb[0].mxu0 %v554
        %v628 = vpop.f32.mrb[0].mxu0
        %v629 = vadd.f32 0.0, %v628
        %v630 = vpop.f32.mrb[0].mxu0
        %631 = vmatprep.mubr.f32.mxu0 0.0
        %632 = vmatmul.mubr.f32.gmra.mrb[0].mxu0 %v556
        %v633 = vpop.f32.mrb[0].mxu0
        %v634 = vadd.f32 0.0, %v633
        %v635 = vpop.f32.mrb[0].mxu0
        %636 = vdwg.mxu0
        %v637 = vmul.f32 %v629, 0.35355338
        %v638 = vmul.f32 %v634, 0.35355338
        %v639 = vsel %vm427, %v637, -inf
        %640 = vmax.xlane.f32.xlu0 %v639
        %v641 = vpop.xlane.xlu0 %640
        %v642 = vsel %vm431, %v638, -inf
        %643 = vmax.xlane.f32.xlu0 %v642
        %v644 = vpop.xlane.xlu0 %643
        %v645 = vsub.f32 %v637, %v641
        %v646 = vsub.f32 %v638, %v644
        %v647 = vmul.f32 %v645, 1.442695
        %v648 = vpow.pop %v647
        %v649 = vmul.f32 %v646, 1.442695
        %v650 = vpow.pop %v649
        %v651 = vsel %vm427, %v648, 0.0
        %652 = vadd.xlane.f32.xlu0 %v651
        %v653 = vpop.xlane.xlu0 %652
        %v654 = vsel %vm431, %v650, 0.0
        %655 = vadd.xlane.f32.xlu0 %v654
        %v656 = vpop.xlane.xlu0 %655
        %v657 = vrcp.pop %v653
        %v658 = vrcp.pop %v656
        %v659 = vmul.f32 %v653, %v657
        %v660 = vmul.f32 %v656, %v658
        %v661 = vsub.f32 2.0, %v659
        %v662 = vsub.f32 2.0, %v660
        %v663 = vmul.f32 %v657, %v661
        %v664 = vmul.f32 %v658, %v662
        %v665 = vmul.f32 %v648, %v663
        %v666 = vmul.f32 %v650, %v664
        %667 = vrot.lane.b32.xlu0 %v327, 56
        %v668 = vpop.permute.xlu0 %667
        %669 = vrot.lane.b32.xlu0 %v332, 56
        %v670 = vpop.permute.xlu0 %669
        %v673 = vsel %vm427, %v665, 0
        %v676 = vsel %vm427, %v666, 0
        %v678 = vsel %vm468, %v670, 0
        %680 = vmatprep.subr.mxu0 0.0
        %681 = vmatpush1.msra.mxu0 %v668
        %682 = vmatprep.subr.mxu0 0.0
        %683 = vmatpush1.msra.mxu0 %v678
        %684 = vmatprep.subr.mxu0 0.0
        %685 = vmatpush1.msra.mxu0 0.0
        %686 = vmatprep.subr.mxu0 0.0
        %687 = vmatpush1.msra.mxu0 0.0
        %688 = vmatprep.subr.mxu0 0.0
        %689 = vmatpush1.msra.mxu0 0.0
        %690 = vmatprep.subr.mxu0 0.0
        %691 = vmatpush1.msra.mxu0 0.0
        %692 = vmatprep.subr.mxu0 0.0
        %693 = vmatpush1.msra.mxu0 0.0
        %694 = vmatprep.subr.mxu0 0.0
        %695 = vmatpush1.msra.mxu0 0.0
        %696 = vmatprep.subr.mxu0 0.0
        %697 = vmatpush1.msra.mxu0 0.0
        %698 = vmatprep.subr.mxu0 0.0
        %699 = vmatpush1.msra.mxu0 0.0
        %700 = vmatprep.subr.mxu0 0.0
        %701 = vmatpush1.msra.mxu0 0.0
        %702 = vmatprep.subr.mxu0 0.0
        %703 = vmatpush1.msra.mxu0 0.0
        %704 = vmatprep.subr.mxu0 0.0
        %705 = vmatpush1.msra.mxu0 0.0
        %706 = vmatprep.subr.mxu0 0.0
        %707 = vmatpush1.msra.mxu0 0.0
        %708 = vmatprep.subr.mxu0 0.0
        %709 = vmatpush1.msra.mxu0 0.0
        %710 = vmatprep.subr.mxu0 0.0
        %711 = vmatpush1.msra.mxu0 0.0
        %712 = vmatprep.subr.mxu0 0.0
        %713 = vmatpush1.msra.mxu0 0.0
        %714 = vmatprep.subr.mxu0 0.0
        %715 = vmatpush1.msra.mxu0 0.0
        %716 = vmatprep.subr.mxu0 0.0
        %717 = vmatpush1.msra.mxu0 0.0
        %718 = vmatprep.subr.mxu0 0.0
        %719 = vmatpush1.msra.mxu0 0.0
        %720 = vmatprep.subr.mxu0 0.0
        %721 = vmatpush1.msra.mxu0 0.0
        %722 = vmatprep.subr.mxu0 0.0
        %723 = vmatpush1.msra.mxu0 0.0
        %724 = vmatprep.subr.mxu0 0.0
        %725 = vmatpush1.msra.mxu0 0.0
        %726 = vmatprep.subr.mxu0 0.0
        %727 = vmatpush1.msra.mxu0 0.0
        %728 = vmatprep.subr.mxu0 0.0
        %729 = vmatpush1.msra.mxu0 0.0
        %730 = vmatprep.subr.mxu0 0.0
        %731 = vmatpush1.msra.mxu0 0.0
        %732 = vmatprep.subr.mxu0 0.0
        %733 = vmatpush1.msra.mxu0 0.0
        %734 = vmatprep.subr.mxu0 0.0
        %735 = vmatpush1.msra.mxu0 0.0
        %736 = vmatprep.subr.mxu0 0.0
        %737 = vmatpush1.msra.mxu0 0.0
        %738 = vmatprep.subr.mxu0 0.0
        %739 = vmatpush1.msra.mxu0 0.0
        %740 = vmatprep.subr.mxu0 0.0
        %741 = vmatpush1.msra.mxu0 0.0
        %742 = vmatprep.subr.mxu0 0.0
        %743 = vmatpush1.msra.mxu0 0.0
        %744 = vmatprep.mubr.f32.mxu0 0.0
        %745 = vmatmul.mubr.f32.gmra.mrb[0].mxu0 %v673
        %v746 = vpop.f32.mrb[0].mxu0
        %v747 = vadd.f32 0.0, %v746
        %v748 = vpop.f32.mrb[0].mxu0
        %749 = vmatprep.mubr.f32.mxu0 0.0
        %750 = vmatmul.mubr.f32.gmra.mrb[0].mxu0 %v676
        %v751 = vpop.f32.mrb[0].mxu0
        %v752 = vadd.f32 0.0, %v751
        %v753 = vpop.f32.mrb[0].mxu0
        %754 = vdwg.mxu0
        %755 = vrot.lane.b32.xlu0 %v327, 112
        %v756 = vpop.permute.xlu0 %755
        %757 = vrot.lane.b32.xlu0 %v332, 112
        %v758 = vpop.permute.xlu0 %757
        %759 = vrot.lane.b32.xlu0 %v327, 80
        %v760 = vpop.permute.xlu0 %759
        %761 = vrot.lane.b32.xlu0 %v332, 80
        %v762 = vpop.permute.xlu0 %761
        %v763 = vsel %vm341, %v756, 0
        %v765 = vsel %vm341, %v758, 0
        %v767 = vsel %vm341, %v760, 0
        %v769 = vsel %vm341, %v762, 0
        %771 = vmatprep.subr.mxu0 0.0
        %772 = vmatpush1.xpose.msra.mxu0 %v767
        %773 = vmatprep.subr.mxu0 0.0
        %774 = vmatpush1.xpose.msra.mxu0 %v769
        %775 = vmatprep.subr.mxu0 0.0
        %776 = vmatpush1.xpose.msra.mxu0 0.0
        %777 = vmatprep.subr.mxu0 0.0
        %778 = vmatpush1.xpose.msra.mxu0 0.0
        %779 = vmatprep.subr.mxu0 0.0
        %780 = vmatpush1.xpose.msra.mxu0 0.0
        %781 = vmatprep.subr.mxu0 0.0
        %782 = vmatpush1.xpose.msra.mxu0 0.0
        %783 = vmatprep.subr.mxu0 0.0
        %784 = vmatpush1.xpose.msra.mxu0 0.0
        %785 = vmatprep.subr.mxu0 0.0
        %786 = vmatpush1.xpose.msra.mxu0 0.0
        %787 = vmatprep.subr.mxu0 0.0
        %788 = vmatpush1.xpose.msra.mxu0 0.0
        %789 = vmatprep.subr.mxu0 0.0
        %790 = vmatpush1.xpose.msra.mxu0 0.0
        %791 = vmatprep.subr.mxu0 0.0
        %792 = vmatpush1.xpose.msra.mxu0 0.0
        %793 = vmatprep.subr.mxu0 0.0
        %794 = vmatpush1.xpose.msra.mxu0 0.0
        %795 = vmatprep.subr.mxu0 0.0
        %796 = vmatpush1.xpose.msra.mxu0 0.0
        %797 = vmatprep.subr.mxu0 0.0
        %798 = vmatpush1.xpose.msra.mxu0 0.0
        %799 = vmatprep.subr.mxu0 0.0
        %800 = vmatpush1.xpose.msra.mxu0 0.0
        %801 = vmatprep.subr.mxu0 0.0
        %802 = vmatpush1.xpose.msra.mxu0 0.0
        %803 = vmatprep.subr.mxu0 0.0
        %804 = vmatpush1.xpose.msra.mxu0 0.0
        %805 = vmatprep.subr.mxu0 0.0
        %806 = vmatpush1.xpose.msra.mxu0 0.0
        %807 = vmatprep.subr.mxu0 0.0
        %808 = vmatpush1.xpose.msra.mxu0 0.0
        %809 = vmatprep.subr.mxu0 0.0
        %810 = vmatpush1.xpose.msra.mxu0 0.0
        %811 = vmatprep.subr.mxu0 0.0
        %812 = vmatpush1.xpose.msra.mxu0 0.0
        %813 = vmatprep.subr.mxu0 0.0
        %814 = vmatpush1.xpose.msra.mxu0 0.0
        %815 = vmatprep.subr.mxu0 0.0
        %816 = vmatpush1.xpose.msra.mxu0 0.0
        %817 = vmatprep.subr.mxu0 0.0
        %818 = vmatpush1.xpose.msra.mxu0 0.0
        %819 = vmatprep.subr.mxu0 0.0
        %820 = vmatpush1.xpose.msra.mxu0 0.0
        %821 = vmatprep.subr.mxu0 0.0
        %822 = vmatpush1.xpose.msra.mxu0 0.0
        %823 = vmatprep.subr.mxu0 0.0
        %824 = vmatpush1.xpose.msra.mxu0 0.0
        %825 = vmatprep.subr.mxu0 0.0
        %826 = vmatpush1.xpose.msra.mxu0 0.0
        %827 = vmatprep.subr.mxu0 0.0
        %828 = vmatpush1.xpose.msra.mxu0 0.0
        %829 = vmatprep.subr.mxu0 0.0
        %830 = vmatpush1.xpose.msra.mxu0 0.0
        %831 = vmatprep.subr.mxu0 0.0
        %832 = vmatpush1.xpose.msra.mxu0 0.0
        %833 = vmatprep.subr.mxu0 0.0
        %834 = vmatpush1.xpose.msra.mxu0 0.0
        %835 = vmatprep.mubr.f32.mxu0 0.0
        %836 = vmatmul.mubr.f32.gmra.mrb[0].mxu0 %v763
        %v837 = vpop.f32.mrb[0].mxu0
        %v838 = vadd.f32 0.0, %v837
        %v839 = vpop.f32.mrb[0].mxu0
        %840 = vmatprep.mubr.f32.mxu0 0.0
        %841 = vmatmul.mubr.f32.gmra.mrb[0].mxu0 %v765
        %v842 = vpop.f32.mrb[0].mxu0
        %v843 = vadd.f32 0.0, %v842
        %v844 = vpop.f32.mrb[0].mxu0
        %845 = vdwg.mxu0
        %v846 = vmul.f32 %v838, 0.35355338
        %v847 = vmul.f32 %v843, 0.35355338
        %v848 = vsel %vm427, %v846, -inf
        %849 = vmax.xlane.f32.xlu0 %v848
        %v850 = vpop.xlane.xlu0 %849
        %v851 = vsel %vm431, %v847, -inf
        %852 = vmax.xlane.f32.xlu0 %v851
        %v853 = vpop.xlane.xlu0 %852
        %v854 = vsub.f32 %v846, %v850
        %v855 = vsub.f32 %v847, %v853
        %v856 = vmul.f32 %v854, 1.442695
        %v857 = vpow.pop %v856
        %v858 = vmul.f32 %v855, 1.442695
        %v859 = vpow.pop %v858
        %v860 = vsel %vm427, %v857, 0.0
        %861 = vadd.xlane.f32.xlu0 %v860
        %v862 = vpop.xlane.xlu0 %861
        %v863 = vsel %vm431, %v859, 0.0
        %864 = vadd.xlane.f32.xlu0 %v863
        %v865 = vpop.xlane.xlu0 %864
        %v866 = vrcp.pop %v862
        %v867 = vrcp.pop %v865
        %v868 = vmul.f32 %v862, %v866
        %v869 = vmul.f32 %v865, %v867
        %v870 = vsub.f32 2.0, %v868
        %v871 = vsub.f32 2.0, %v869
        %v872 = vmul.f32 %v866, %v870
        %v873 = vmul.f32 %v867, %v871
        %v874 = vmul.f32 %v857, %v872
        %v875 = vmul.f32 %v859, %v873
        %876 = vrot.lane.b32.xlu0 %v327, 48
        %v877 = vpop.permute.xlu0 %876
        %878 = vrot.lane.b32.xlu0 %v332, 48
        %v879 = vpop.permute.xlu0 %878
        %v882 = vsel %vm427, %v874, 0
        %v885 = vsel %vm427, %v875, 0
        %v887 = vsel %vm468, %v879, 0
        %889 = vmatprep.subr.mxu0 0.0
        %890 = vmatpush1.msra.mxu0 %v877
        %891 = vmatprep.subr.mxu0 0.0
        %892 = vmatpush1.msra.mxu0 %v887
        %893 = vmatprep.subr.mxu0 0.0
        %894 = vmatpush1.msra.mxu0 0.0
        %895 = vmatprep.subr.mxu0 0.0
        %896 = vmatpush1.msra.mxu0 0.0
        %897 = vmatprep.subr.mxu0 0.0
        %898 = vmatpush1.msra.mxu0 0.0
        %899 = vmatprep.subr.mxu0 0.0
        %900 = vmatpush1.msra.mxu0 0.0
        %901 = vmatprep.subr.mxu0 0.0
        %902 = vmatpush1.msra.mxu0 0.0
        %903 = vmatprep.subr.mxu0 0.0
        %904 = vmatpush1.msra.mxu0 0.0
        %905 = vmatprep.subr.mxu0 0.0
        %906 = vmatpush1.msra.mxu0 0.0
        %907 = vmatprep.subr.mxu0 0.0
        %908 = vmatpush1.msra.mxu0 0.0
        %909 = vmatprep.subr.mxu0 0.0
        %910 = vmatpush1.msra.mxu0 0.0
        %911 = vmatprep.subr.mxu0 0.0
        %912 = vmatpush1.msra.mxu0 0.0
        %913 = vmatprep.subr.mxu0 0.0
        %914 = vmatpush1.msra.mxu0 0.0
        %915 = vmatprep.subr.mxu0 0.0
        %916 = vmatpush1.msra.mxu0 0.0
        %917 = vmatprep.subr.mxu0 0.0
        %918 = vmatpush1.msra.mxu0 0.0
        %919 = vmatprep.subr.mxu0 0.0
        %920 = vmatpush1.msra.mxu0 0.0
        %921 = vmatprep.subr.mxu0 0.0
        %922 = vmatpush1.msra.mxu0 0.0
        %923 = vmatprep.subr.mxu0 0.0
        %924 = vmatpush1.msra.mxu0 0.0
        %925 = vmatprep.subr.mxu0 0.0
        %926 = vmatpush1.msra.mxu0 0.0
        %927 = vmatprep.subr.mxu0 0.0
        %928 = vmatpush1.msra.mxu0 0.0
        %929 = vmatprep.subr.mxu0 0.0
        %930 = vmatpush1.msra.mxu0 0.0
        %931 = vmatprep.subr.mxu0 0.0
        %932 = vmatpush1.msra.mxu0 0.0
        %933 = vmatprep.subr.mxu0 0.0
        %934 = vmatpush1.msra.mxu0 0.0
        %935 = vmatprep.subr.mxu0 0.0
        %936 = vmatpush1.msra.mxu0 0.0
        %937 = vmatprep.subr.mxu0 0.0
        %938 = vmatpush1.msra.mxu0 0.0
        %939 = vmatprep.subr.mxu0 0.0
        %940 = vmatpush1.msra.mxu0 0.0
        %941 = vmatprep.subr.mxu0 0.0
        %942 = vmatpush1.msra.mxu0 0.0
        %943 = vmatprep.subr.mxu0 0.0
        %944 = vmatpush1.msra.mxu0 0.0
        %945 = vmatprep.subr.mxu0 0.0
        %946 = vmatpush1.msra.mxu0 0.0
        %947 = vmatprep.subr.mxu0 0.0
        %948 = vmatpush1.msra.mxu0 0.0
        %949 = vmatprep.subr.mxu0 0.0
        %950 = vmatpush1.msra.mxu0 0.0
        %951 = vmatprep.subr.mxu0 0.0
        %952 = vmatpush1.msra.mxu0 0.0
        %953 = vmatprep.mubr.f32.mxu0 0.0
        %954 = vmatmul.mubr.f32.gmra.mrb[0].mxu0 %v882
        %v955 = vpop.f32.mrb[0].mxu0
        %v956 = vadd.f32 0.0, %v955
        %v957 = vpop.f32.mrb[0].mxu0
        %958 = vmatprep.mubr.f32.mxu0 0.0
        %959 = vmatmul.mubr.f32.gmra.mrb[0].mxu0 %v885
        %v960 = vpop.f32.mrb[0].mxu0
        %v961 = vadd.f32 0.0, %v960
        %v962 = vpop.f32.mrb[0].mxu0
        %963 = vdwg.mxu0
        %964 = vrot.lane.b32.xlu0 %v327, 104
        %v965 = vpop.permute.xlu0 %964
        %966 = vrot.lane.b32.xlu0 %v332, 104
        %v967 = vpop.permute.xlu0 %966
        %968 = vrot.lane.b32.xlu0 %v327, 72
        %v969 = vpop.permute.xlu0 %968
        %970 = vrot.lane.b32.xlu0 %v332, 72
        %v971 = vpop.permute.xlu0 %970
        %v972 = vsel %vm341, %v965, 0
        %v974 = vsel %vm341, %v967, 0
        %v976 = vsel %vm341, %v969, 0
        %v978 = vsel %vm341, %v971, 0
        %980 = vmatprep.subr.mxu0 0.0
        %981 = vmatpush1.xpose.msra.mxu0 %v976
        %982 = vmatprep.subr.mxu0 0.0
        %983 = vmatpush1.xpose.msra.mxu0 %v978
        %984 = vmatprep.subr.mxu0 0.0
        %985 = vmatpush1.xpose.msra.mxu0 0.0
        %986 = vmatprep.subr.mxu0 0.0
        %987 = vmatpush1.xpose.msra.mxu0 0.0
        %988 = vmatprep.subr.mxu0 0.0
        %989 = vmatpush1.xpose.msra.mxu0 0.0
        %990 = vmatprep.subr.mxu0 0.0
        %991 = vmatpush1.xpose.msra.mxu0 0.0
        %992 = vmatprep.subr.mxu0 0.0
        %993 = vmatpush1.xpose.msra.mxu0 0.0
        %994 = vmatprep.subr.mxu0 0.0
        %995 = vmatpush1.xpose.msra.mxu0 0.0
        %996 = vmatprep.subr.mxu0 0.0
        %997 = vmatpush1.xpose.msra.mxu0 0.0
        %998 = vmatprep.subr.mxu0 0.0
        %999 = vmatpush1.xpose.msra.mxu0 0.0
        %1000 = vmatprep.subr.mxu0 0.0
        %1001 = vmatpush1.xpose.msra.mxu0 0.0
        %1002 = vmatprep.subr.mxu0 0.0
        %1003 = vmatpush1.xpose.msra.mxu0 0.0
        %1004 = vmatprep.subr.mxu0 0.0
        %1005 = vmatpush1.xpose.msra.mxu0 0.0
        %1006 = vmatprep.subr.mxu0 0.0
        %1007 = vmatpush1.xpose.msra.mxu0 0.0
        %1008 = vmatprep.subr.mxu0 0.0
        %1009 = vmatpush1.xpose.msra.mxu0 0.0
        %1010 = vmatprep.subr.mxu0 0.0
        %1011 = vmatpush1.xpose.msra.mxu0 0.0
        %1012 = vmatprep.subr.mxu0 0.0
        %1013 = vmatpush1.xpose.msra.mxu0 0.0
        %1014 = vmatprep.subr.mxu0 0.0
        %1015 = vmatpush1.xpose.msra.mxu0 0.0
        %1016 = vmatprep.subr.mxu0 0.0
        %1017 = vmatpush1.xpose.msra.mxu0 0.0
        %1018 = vmatprep.subr.mxu0 0.0
        %1019 = vmatpush1.xpose.msra.mxu0 0.0
        %1020 = vmatprep.subr.mxu0 0.0
        %1021 = vmatpush1.xpose.msra.mxu0 0.0
        %1022 = vmatprep.subr.mxu0 0.0
        %1023 = vmatpush1.xpose.msra.mxu0 0.0
        %1024 = vmatprep.subr.mxu0 0.0
        %1025 = vmatpush1.xpose.msra.mxu0 0.0
        %1026 = vmatprep.subr.mxu0 0.0
        %1027 = vmatpush1.xpose.msra.mxu0 0.0
        %1028 = vmatprep.subr.mxu0 0.0
        %1029 = vmatpush1.xpose.msra.mxu0 0.0
        %1030 = vmatprep.subr.mxu0 0.0
        %1031 = vmatpush1.xpose.msra.mxu0 0.0
        %1032 = vmatprep.subr.mxu0 0.0
        %1033 = vmatpush1.xpose.msra.mxu0 0.0
        %1034 = vmatprep.subr.mxu0 0.0
        %1035 = vmatpush1.xpose.msra.mxu0 0.0
        %1036 = vmatprep.subr.mxu0 0.0
        %1037 = vmatpush1.xpose.msra.mxu0 0.0
        %1038 = vmatprep.subr.mxu0 0.0
        %1039 = vmatpush1.xpose.msra.mxu0 0.0
        %1040 = vmatprep.subr.mxu0 0.0
        %1041 = vmatpush1.xpose.msra.mxu0 0.0
        %1042 = vmatprep.subr.mxu0 0.0
        %1043 = vmatpush1.xpose.msra.mxu0 0.0
        %1044 = vmatprep.mubr.f32.mxu0 0.0
        %1045 = vmatmul.mubr.f32.gmra.mrb[0].mxu0 %v972
        %v1046 = vpop.f32.mrb[0].mxu0
        %v1047 = vadd.f32 0.0, %v1046
        %v1048 = vpop.f32.mrb[0].mxu0
        %1049 = vmatprep.mubr.f32.mxu0 0.0
        %1050 = vmatmul.mubr.f32.gmra.mrb[0].mxu0 %v974
        %v1051 = vpop.f32.mrb[0].mxu0
        %v1052 = vadd.f32 0.0, %v1051
        %v1053 = vpop.f32.mrb[0].mxu0
        %1054 = vdwg.mxu0
        %v1055 = vmul.f32 %v1047, 0.35355338
        %v1056 = vmul.f32 %v1052, 0.35355338
        %v1057 = vsel %vm427, %v1055, -inf
        %1058 = vmax.xlane.f32.xlu0 %v1057
        %v1059 = vpop.xlane.xlu0 %1058
        %v1060 = vsel %vm431, %v1056, -inf
        %1061 = vmax.xlane.f32.xlu0 %v1060
        %v1062 = vpop.xlane.xlu0 %1061
        %v1063 = vsub.f32 %v1055, %v1059
        %v1064 = vsub.f32 %v1056, %v1062
        %v1065 = vmul.f32 %v1063, 1.442695
        %v1066 = vpow.pop %v1065
        %v1067 = vmul.f32 %v1064, 1.442695
        %v1068 = vpow.pop %v1067
        %v1069 = vsel %vm427, %v1066, 0.0
        %1070 = vadd.xlane.f32.xlu0 %v1069
        %v1071 = vpop.xlane.xlu0 %1070
        %v1072 = vsel %vm431, %v1068, 0.0
        %1073 = vadd.xlane.f32.xlu0 %v1072
        %v1074 = vpop.xlane.xlu0 %1073
        %v1075 = vrcp.pop %v1071
        %v1076 = vrcp.pop %v1074
        %v1077 = vmul.f32 %v1071, %v1075
        %v1078 = vmul.f32 %v1074, %v1076
        %v1079 = vsub.f32 2.0, %v1077
        %v1080 = vsub.f32 2.0, %v1078
        %v1081 = vmul.f32 %v1075, %v1079
        %v1082 = vmul.f32 %v1076, %v1080
        %v1083 = vmul.f32 %v1066, %v1081
        %v1084 = vmul.f32 %v1068, %v1082
        %1085 = vrot.lane.b32.xlu0 %v327, 40
        %v1086 = vpop.permute.xlu0 %1085
        %1087 = vrot.lane.b32.xlu0 %v332, 40
        %v1088 = vpop.permute.xlu0 %1087
        %v1091 = vsel %vm427, %v1083, 0
        %v1094 = vsel %vm427, %v1084, 0
        %v1096 = vsel %vm468, %v1088, 0
        %1098 = vmatprep.subr.mxu0 0.0
        %1099 = vmatpush1.msra.mxu0 %v1086
        %1100 = vmatprep.subr.mxu0 0.0
        %1101 = vmatpush1.msra.mxu0 %v1096
        %1102 = vmatprep.subr.mxu0 0.0
        %1103 = vmatpush1.msra.mxu0 0.0
        %1104 = vmatprep.subr.mxu0 0.0
        %1105 = vmatpush1.msra.mxu0 0.0
        %1106 = vmatprep.subr.mxu0 0.0
        %1107 = vmatpush1.msra.mxu0 0.0
        %1108 = vmatprep.subr.mxu0 0.0
        %1109 = vmatpush1.msra.mxu0 0.0
        %1110 = vmatprep.subr.mxu0 0.0
        %1111 = vmatpush1.msra.mxu0 0.0
        %1112 = vmatprep.subr.mxu0 0.0
        %1113 = vmatpush1.msra.mxu0 0.0
        %1114 = vmatprep.subr.mxu0 0.0
        %1115 = vmatpush1.msra.mxu0 0.0
        %1116 = vmatprep.subr.mxu0 0.0
        %1117 = vmatpush1.msra.mxu0 0.0
        %1118 = vmatprep.subr.mxu0 0.0
        %1119 = vmatpush1.msra.mxu0 0.0
        %1120 = vmatprep.subr.mxu0 0.0
        %1121 = vmatpush1.msra.mxu0 0.0
        %1122 = vmatprep.subr.mxu0 0.0
        %1123 = vmatpush1.msra.mxu0 0.0
        %1124 = vmatprep.subr.mxu0 0.0
        %1125 = vmatpush1.msra.mxu0 0.0
        %1126 = vmatprep.subr.mxu0 0.0
        %1127 = vmatpush1.msra.mxu0 0.0
        %1128 = vmatprep.subr.mxu0 0.0
        %1129 = vmatpush1.msra.mxu0 0.0
        %1130 = vmatprep.subr.mxu0 0.0
        %1131 = vmatpush1.msra.mxu0 0.0
        %1132 = vmatprep.subr.mxu0 0.0
        %1133 = vmatpush1.msra.mxu0 0.0
        %1134 = vmatprep.subr.mxu0 0.0
        %1135 = vmatpush1.msra.mxu0 0.0
        %1136 = vmatprep.subr.mxu0 0.0
        %1137 = vmatpush1.msra.mxu0 0.0
        %1138 = vmatprep.subr.mxu0 0.0
        %1139 = vmatpush1.msra.mxu0 0.0
        %1140 = vmatprep.subr.mxu0 0.0
        %1141 = vmatpush1.msra.mxu0 0.0
        %1142 = vmatprep.subr.mxu0 0.0
        %1143 = vmatpush1.msra.mxu0 0.0
        %1144 = vmatprep.subr.mxu0 0.0
        %1145 = vmatpush1.msra.mxu0 0.0
        %1146 = vmatprep.subr.mxu0 0.0
        %1147 = vmatpush1.msra.mxu0 0.0
        %1148 = vmatprep.subr.mxu0 0.0
        %1149 = vmatpush1.msra.mxu0 0.0
        %1150 = vmatprep.subr.mxu0 0.0
        %1151 = vmatpush1.msra.mxu0 0.0
        %1152 = vmatprep.subr.mxu0 0.0
        %1153 = vmatpush1.msra.mxu0 0.0
        %1154 = vmatprep.subr.mxu0 0.0
        %1155 = vmatpush1.msra.mxu0 0.0
        %1156 = vmatprep.subr.mxu0 0.0
        %1157 = vmatpush1.msra.mxu0 0.0
        %1158 = vmatprep.subr.mxu0 0.0
        %1159 = vmatpush1.msra.mxu0 0.0
        %1160 = vmatprep.subr.mxu0 0.0
        %1161 = vmatpush1.msra.mxu0 0.0
        %1162 = vmatprep.mubr.f32.mxu0 0.0
        %1163 = vmatmul.mubr.f32.gmra.mrb[0].mxu0 %v1091
        %v1164 = vpop.f32.mrb[0].mxu0
        %v1165 = vadd.f32 0.0, %v1164
        %v1166 = vpop.f32.mrb[0].mxu0
        %1167 = vmatprep.mubr.f32.mxu0 0.0
        %1168 = vmatmul.mubr.f32.gmra.mrb[0].mxu0 %v1094
        %v1169 = vpop.f32.mrb[0].mxu0
        %v1170 = vadd.f32 0.0, %v1169
        %v1171 = vpop.f32.mrb[0].mxu0
        %1172 = vdwg.mxu0
        %1175 = vrot.lane.b32.xlu0 %v747, 8
        %v1176 = vpop.permute.xlu0 %1175
        %1177 = vrot.lane.b32.xlu0 %v752, 8
        %v1178 = vpop.permute.xlu0 %1177
        %1183 = vrot.lane.b32.xlu0 %v956, 16
        %v1184 = vpop.permute.xlu0 %1183
        %1185 = vrot.lane.b32.xlu0 %v961, 16
        %v1186 = vpop.permute.xlu0 %1185
        %1191 = vrot.lane.b32.xlu0 %v1165, 24
        %v1192 = vpop.permute.xlu0 %1191
        %1193 = vrot.lane.b32.xlu0 %v1170, 24
        %v1194 = vpop.permute.xlu0 %1193
        %v1197 = vsel %vm341, %v538, %v1176
        %v1198 = vsel %vm341, %v543, %v1178
        %vm1199 = vcmask 130048
        %v1200 = vsel %vm1199, %v1197, %v1184
        %v1201 = vsel %vm1199, %v1198, %v1186
        %vm1202 = vcmask 195584
        %v1203 = vsel %vm1202, %v1200, %v1192
        %v1204 = vsel %vm1202, %v1201, %v1194
        %v1205 = vld [vmem:[#allocation2] sm:$0xff]
        %v1206 = vld [vmem:[#allocation2 + $0x8] sm:$0xff]
        %v1207 = vld [vmem:[#allocation2 + $0x10] sm:$0xff]
        %v1208 = vld [vmem:[#allocation2 + $0x18] sm:$0xff]
        %v1209 = vld [vmem:[%s4] sm:$0x1]
        %v1211 = vlaneseq
        %v1212 = vshrl.u32 %v1211, 7
        %v1213 = vsub.s32 0, %v1212
        %v1214 = vrot.slane %v1209, %v1213
        %v1217 = vsel %vm253, %v1203, 0
        %v1220 = vsel %vm253, %v1204, 0
        %1222 = vmatprep.subr.mxu0 0.0
        %1223 = vmatpush1.msra.mxu0 %v1205
        %1224 = vmatprep.subr.mxu0 0.0
        %1225 = vmatpush1.msra.mxu0 %v1206
        %1226 = vmatprep.subr.mxu0 0.0
        %1227 = vmatpush1.msra.mxu0 %v1207
        %1228 = vmatprep.subr.mxu0 0.0
        %1229 = vmatpush1.msra.mxu0 %v1208
        %1230 = vmatprep.subr.mxu0 0.0
        %1231 = vmatpush1.msra.mxu0 0.0
        %1232 = vmatprep.subr.mxu0 0.0
        %1233 = vmatpush1.msra.mxu0 0.0
        %1234 = vmatprep.subr.mxu0 0.0
        %1235 = vmatpush1.msra.mxu0 0.0
        %1236 = vmatprep.subr.mxu0 0.0
        %1237 = vmatpush1.msra.mxu0 0.0
        %1238 = vmatprep.subr.mxu0 0.0
        %1239 = vmatpush1.msra.mxu0 0.0
        %1240 = vmatprep.subr.mxu0 0.0
        %1241 = vmatpush1.msra.mxu0 0.0
        %1242 = vmatprep.subr.mxu0 0.0
        %1243 = vmatpush1.msra.mxu0 0.0
        %1244 = vmatprep.subr.mxu0 0.0
        %1245 = vmatpush1.msra.mxu0 0.0
        %1246 = vmatprep.subr.mxu0 0.0
        %1247 = vmatpush1.msra.mxu0 0.0
        %1248 = vmatprep.subr.mxu0 0.0
        %1249 = vmatpush1.msra.mxu0 0.0
        %1250 = vmatprep.subr.mxu0 0.0
        %1251 = vmatpush1.msra.mxu0 0.0
        %1252 = vmatprep.subr.mxu0 0.0
        %1253 = vmatpush1.msra.mxu0 0.0
        %1254 = vmatprep.subr.mxu0 0.0
        %1255 = vmatpush1.msra.mxu0 0.0
        %1256 = vmatprep.subr.mxu0 0.0
        %1257 = vmatpush1.msra.mxu0 0.0
        %1258 = vmatprep.subr.mxu0 0.0
        %1259 = vmatpush1.msra.mxu0 0.0
        %1260 = vmatprep.subr.mxu0 0.0
        %1261 = vmatpush1.msra.mxu0 0.0
        %1262 = vmatprep.subr.mxu0 0.0
        %1263 = vmatpush1.msra.mxu0 0.0
        %1264 = vmatprep.subr.mxu0 0.0
        %1265 = vmatpush1.msra.mxu0 0.0
        %1266 = vmatprep.subr.mxu0 0.0
        %1267 = vmatpush1.msra.mxu0 0.0
        %1268 = vmatprep.subr.mxu0 0.0
        %1269 = vmatpush1.msra.mxu0 0.0
        %1270 = vmatprep.subr.mxu0 0.0
        %1271 = vmatpush1.msra.mxu0 0.0
        %1272 = vmatprep.subr.mxu0 0.0
        %1273 = vmatpush1.msra.mxu0 0.0
        %1274 = vmatprep.subr.mxu0 0.0
        %1275 = vmatpush1.msra.mxu0 0.0
        %1276 = vmatprep.subr.mxu0 0.0
        %1277 = vmatpush1.msra.mxu0 0.0
        %1278 = vmatprep.subr.mxu0 0.0
        %1279 = vmatpush1.msra.mxu0 0.0
        %1280 = vmatprep.subr.mxu0 0.0
        %1281 = vmatpush1.msra.mxu0 0.0
        %1282 = vmatprep.subr.mxu0 0.0
        %1283 = vmatpush1.msra.mxu0 0.0
        %1284 = vmatprep.subr.mxu0 0.0
        %1285 = vmatpush1.msra.mxu0 0.0
        %1286 = vmatprep.mubr.f32.mxu0 0.0
        %1287 = vmatmul.mubr.f32.gmra.mrb[0].mxu0 %v1217
        %v1288 = vpop.f32.mrb[0].mxu0
        %v1289 = vadd.f32 %v1214, %v1288
        %v1290 = vpop.f32.mrb[0].mxu0
        %1291 = vmatprep.mubr.f32.mxu0 0.0
        %1292 = vmatmul.mubr.f32.gmra.mrb[0].mxu0 %v1220
        %v1293 = vpop.f32.mrb[0].mxu0
        %v1294 = vadd.f32 %v1214, %v1293
        %v1295 = vpop.f32.mrb[0].mxu0
        %1296 = vdwg.mxu0
        %1297 = vst.msk [vmem:[%s239] sm:$0xff] %vm253, %v1289
        %vm1298 = vcmask 253952
        %1299 = vst.msk [vmem:[%s239 + $0x8] sm:$0x1] %vm1298, %v1294
        %p1300 = scmp.lt.s32.totalorder %s17, 1
        %s1301 = scalar_select %p1300, %s17, 1
        %s1302 = smul.addr %s1301, 2
        %s1303 = smul.addr %s1302, 8
        %s1304 = scalar_lea.vmem %s5, %s1303
        // Predicated region
        $region45: #{tpu_custom_call.1} parent=39 // pred_check
          %p1305 = pneg %p145
        $region46: #{tpu_custom_call.1} parent=39 // pred_check_branch
          %1307 = sbr.rel (%p1305) target = $region48
        $region47: #{tpu_custom_call.1} parent=39 // pred_region
          _
        $region48: #{tpu_custom_call.1} parent=39 // pred_fallthru
          _
      $region40: #{tpu_custom_call.1} parent=5 // pred_fallthru
        _
      %p1308 = scmp.le.s32.totalorder 2, %s12
      // Predicated region
      $region49: #{tpu_custom_call.1} parent=5 // pred_check
        %p1309 = pneg %p1308
      $region50: #{tpu_custom_call.1} parent=5 // pred_check_branch
        %1311 = sbr.rel (%p1309) target = $region52
      $region51: #{tpu_custom_call.1} parent=5 // pred_region
        %s1312 = ssub.s32 %s12, 2
        // Predicated region
        $region53: #{tpu_custom_call.1} parent=51 // pred_check
          %p1313 = pneg %p151
        $region54: #{tpu_custom_call.1} parent=51 // pred_check_branch
          %1315 = sbr.rel (%p1313) target = $region56
        $region55: #{tpu_custom_call.1} parent=51 // pred_region
          %p1316 = scmp.lt.s32.totalorder %s18, 1
          %s1317 = scalar_select %p1316, %s18, 1
          %s1318 = smul.addr %s1317, 2
          %s1319 = smul.addr %s1318, 8
          %s1320 = scalar_lea.vmem %s5, %s1319
        $region56: #{tpu_custom_call.1} parent=51 // pred_fallthru
          _
      $region52: #{tpu_custom_call.1} parent=5 // pred_fallthru
        _
    $region6: #{tpu_custom_call.1} parent=1 // loop_footer
      %s16 = sadd.s32 1, %s12
    $region7: #{tpu_custom_call.1} parent=1 // loop_footer_branch
      %11 = sbr.rel target = $region3
    $region8: #{tpu_custom_call.1} parent=1 // loop_exit
      _
    %1321 = vsyncpa [#allocation3], 1
    %s1322 = scalar_lea.sflag [#allocation3], 1
    %1323 = vsyncpa %s1322, 1

</llo_original>
